<compile_context>
chip_gen: v7x
topology: tpu7x:2x2x1
jax: 0.10.0
libtpu: 0.0.40
codegen_flags: <defaults>
</compile_context>

<pallas_src>
import functools

import jax
import jax.numpy as jnp
from jax.experimental import pallas as pl
from jax.experimental.pallas import tpu as pltpu

_BN_EPS = 1e-5
_MIN_COUT = 128          # lane-dense channel floor; padded channels stay exactly zero


def _vmem_limit_bytes():
    cap = 128 * 1024 * 1024
    try:
        info = pltpu.get_tpu_info()
        cap = int(getattr(info, "vmem_capacity_bytes", cap))
    except Exception:
        pass
    # Half of physical VMEM per core: 32 MiB on v7x, 64 MiB on v5e/v6e.
    return max(32 * 1024 * 1024, min(cap // 2, 80 * 1024 * 1024))


_VMEM_LIMIT = _vmem_limit_bytes()


def _round_up(x, m):
    return ((x + m - 1) // m) * m


# ----------------------------------------------------------------------------
# Single-K tiled GEMM: conv-as-GEMM + folded-BN shift + optional residual + ReLU
# ----------------------------------------------------------------------------
def _make_gemm_kernel(relu, has_res):
    def kernel(a_ref, w_ref, shift_ref, *rest):
        if has_res:
            res_ref, o_ref = rest
        else:
            (o_ref,) = rest
        y = jnp.dot(a_ref[...], w_ref[...], preferred_element_type=jnp.float32)
        y = y + shift_ref[...]
        if has_res:
            y = y + res_ref[...].astype(jnp.float32)
        if relu:
            y = jnp.maximum(y, 0.0)
        o_ref[...] = y.astype(o_ref.dtype)

    return kernel


@functools.lru_cache(maxsize=None)
def _gemm_call(M, K, N, tm, tn, relu, has_res):
    in_specs = [
        pl.BlockSpec((tm, K), lambda i, j: (i, 0)),    # A block reused across j
        pl.BlockSpec((K, tn), lambda i, j: (0, j)),
        pl.BlockSpec((1, tn), lambda i, j: (0, j)),
    ]
    if has_res:
        in_specs.append(pl.BlockSpec((tm, tn), lambda i, j: (i, j)))
    call = pl.pallas_call(
        _make_gemm_kernel(relu, has_res),
        out_shape=jax.ShapeDtypeStruct((M, N), jnp.bfloat16),
        grid=(M // tm, N // tn),
        in_specs=in_specs,
        out_specs=pl.BlockSpec((tm, tn), lambda i, j: (i, j)),
        compiler_params=pltpu.CompilerParams(
            dimension_semantics=("parallel", "parallel"),
            vmem_limit_bytes=_VMEM_LIMIT),
    )
    return jax.jit(call)


def _tile_m(m):
    # Single M block for small M (full-dim blocks are always layout-legal); otherwise
    # pick the biggest 256..1024 tile that divides M exactly (ResNet Ms have a 49
    # factor, hence 392/784/896), falling back to a padded 256 tile.
    if m <= 1024:
        return m, m
    for tm in (1024, 896, 784, 512, 448, 392, 384, 320, 256):
        if m % tm == 0:
            return tm, m
    return 256, _round_up(m, 256)


def _gemm_bn_act(a, w2d, shift, relu, res=None):
    m, k = a.shape
    n = w2d.shape[1]
    assert k <= 8192, "full-K GEMM expects K <= 8192"
    tm, mp = _tile_m(m)
    np_ = max(_round_up(n, 128), 128)
    if np_ != n:                                       # not hit for ResNet50 shapes
        w2d = jnp.pad(w2d, ((0, 0), (0, np_ - n)))
        shift = jnp.pad(shift, ((0, 0), (0, np_ - n)))
        if res is not None:
            res = jnp.pad(res, ((0, 0), (0, np_ - n)))
    tn = 256 if np_ % 256 == 0 else 128
    if mp != m:                                        # not hit for ResNet50 shapes
        a = jnp.pad(a, ((0, mp - m), (0, 0)))
        if res is not None:
            res = jnp.pad(res, ((0, mp - m), (0, 0)))
    args = (a, w2d, shift) + ((res,) if res is not None else ())
    out = _gemm_call(mp, k, np_, tm, tn, bool(relu), res is not None)(*args)
    if mp != m or np_ != n:
        out = out[:m, :n]
    return out


# ----------------------------------------------------------------------------
# Implicit-im2col kernel for stride-1 3x3 convs: 9 accumulating MXU matmuls,
# row-tiled grid, no (HW, 9C) patch matrix anywhere.
# ----------------------------------------------------------------------------
def _conv3x3_kernel(x_ref, w_ref, shift_ref, o_ref, *, W, TR, n_rblocks, relu):
    # x_ref: (L, C) flat activation, L = (H+4)*W (2 zero rows padded top & bottom).
    # w_ref: (9, C, Coutp); shift_ref: (1, Coutp); o_ref: (TR*W, Coutp).
    m = TR * W
    base = 0 if n_rblocks == 1 else pl.program_id(1) * m
    col = jax.lax.broadcasted_iota(jnp.int32, (m, 1), 0) % W
    left = col == 0
    right = col == (W - 1)
    zero = jnp.zeros((), x_ref.dtype)
    acc = None
    for di in range(3):
        for dj in range(3):
            start = base + (di + 1) * W + (dj - 1)
            t = x_ref[pl.ds(start, m), :]
            # The flat layout wraps at the left/right image edges; mask those columns
            # to reproduce the zero W-padding of the conv.
            if dj == 0:
                t = jnp.where(left, zero, t)
            elif dj == 2:
                t = jnp.where(right, zero, t)
            prod = jnp.dot(t, w_ref[di * 3 + dj], preferred_element_type=jnp.float32)
            acc = prod if acc is None else acc + prod
    y = acc + shift_ref[...]
    if relu:
        y = jnp.maximum(y, 0.0)
    o_ref[...] = y.astype(o_ref.dtype)


def _row_tile(H, W):
    # Smallest row tile giving >= ~384 output rows per step (good MXU M) while
    # satisfying the (8, 128) layout rule; otherwise process the whole image.
    for tr in range(1, H + 1):
        if H % tr == 0 and (tr * W) % 8 == 0 and tr * W >= 384:
            return tr
    return H


@functools.lru_cache(maxsize=None)
def _conv3x3_call(B, H, W, C, Coutp, TR, relu):
    hw = H * W
    L = (H + 4) * W
    n_rblocks = H // TR
    kernel = functools.partial(_conv3x3_kernel, W=W, TR=TR,
                               n_rblocks=n_rblocks, relu=relu)
    call = pl.pallas_call(
        kernel,
        out_shape=jax.ShapeDtypeStruct((B, hw, Coutp), jnp.bfloat16),
        grid=(B, n_rblocks),
        in_specs=[
            pl.BlockSpec((None, L, C), lambda b, r: (b, 0, 0)),      # resident per b
            pl.BlockSpec((9, C, Coutp), lambda b, r: (0, 0, 0)),
            pl.BlockSpec((1, Coutp), lambda b, r: (0, 0)),
        ],
        out_specs=pl.BlockSpec((None, TR * W, Coutp), lambda b, r: (b, r, 0)),
        compiler_params=pltpu.CompilerParams(
            dimension_semantics=("parallel", "parallel"),
            vmem_limit_bytes=_VMEM_LIMIT),
    )
    return jax.jit(call)


def _conv3x3_s1(x, w, shift, relu):
    B, H, W_, C = x.shape
    Coutp = w.shape[-1]
    xp = jnp.pad(x, ((0, 0), (2, 2), (0, 0), (0, 0)))   # single pad pass (2 rows each side)
    xf = xp.reshape(B, (H + 4) * W_, C)
    TR = _row_tile(H, W_)
    out = _conv3x3_call(B, H, W_, C, Coutp, TR, bool(relu))(
        xf, w.reshape(9, C, Coutp), shift)
    return out.reshape(B, H, W_, Coutp)


# ----------------------------------------------------------------------------
# MaxPool 3x3 stride 2 pad 1 (polyphase split; no 9x tap stack in HBM)
# ----------------------------------------------------------------------------
def _maxpool_kernel(ee_ref, eo_ref, oe_ref, oo_ref, o_ref):
    Ho, Wo, _ = o_ref.shape
    ee = ee_ref[...]
    eo = eo_ref[...]
    oe = oe_ref[...]
    oo = oo_ref[...]
    m = jnp.maximum(ee[:Ho, :Wo], ee[:Ho, 1:Wo + 1])
    m = jnp.maximum(m, ee[1:Ho + 1, :Wo])
    m = jnp.maximum(m, ee[1:Ho + 1, 1:Wo + 1])
    m = jnp.maximum(m, eo[:Ho, :Wo])
    m = jnp.maximum(m, eo[1:Ho + 1, :Wo])
    m = jnp.maximum(m, oe[:Ho, :Wo])
    m = jnp.maximum(m, oe[:Ho, 1:Wo + 1])
    m = jnp.maximum(m, oo[:Ho, :Wo])
    o_ref[...] = m


@functools.lru_cache(maxsize=None)
def _maxpool_call(B, Ho, Wo, C):
    in_spec = pl.BlockSpec((None, Ho + 1, Wo + 1, C), lambda b: (b, 0, 0, 0))
    call = pl.pallas_call(
        _maxpool_kernel,
        out_shape=jax.ShapeDtypeStruct((B, Ho, Wo, C), jnp.bfloat16),
        grid=(B,),
        in_specs=[in_spec, in_spec, in_spec, in_spec],
        out_specs=pl.BlockSpec((None, Ho, Wo, C), lambda b: (b, 0, 0, 0)),
        compiler_params=pltpu.CompilerParams(
            dimension_semantics=("parallel",),
            vmem_limit_bytes=_VMEM_LIMIT),
    )
    return jax.jit(call)


def maxpool_3x3_s2(x):
    B, H, W_, C = x.shape
    assert H % 2 == 0 and W_ % 2 == 0
    Ho, Wo = H // 2, W_ // 2
    xq = jnp.pad(x, ((0, 0), (1, 1), (1, 1), (0, 0)), constant_values=-jnp.inf)
    ee = xq[:, 0::2, 0::2, :]
    eo = xq[:, 0::2, 1::2, :]
    oe = xq[:, 1::2, 0::2, :]
    oo = xq[:, 1::2, 1::2, :]
    return _maxpool_call(B, Ho, Wo, C)(ee, eo, oe, oo)


# ----------------------------------------------------------------------------
# Global average pool (AdaptiveAvgPool2d((1,1)) + flatten)
# ----------------------------------------------------------------------------
def _avgpool_kernel(x_ref, o_ref):
    o_ref[...] = jnp.mean(x_ref[...].astype(jnp.float32), axis=0, keepdims=True)


@functools.lru_cache(maxsize=None)
def _avgpool_call(B, HW, C):
    call = pl.pallas_call(
        _avgpool_kernel,
        out_shape=jax.ShapeDtypeStruct((B, 1, C), jnp.float32),
        grid=(B,),
        in_specs=[pl.BlockSpec((None, HW, C), lambda b: (b, 0, 0))],
        out_specs=pl.BlockSpec((None, 1, C), lambda b: (b, 0, 0)),
        compiler_params=pltpu.CompilerParams(
            dimension_semantics=("parallel",),
            vmem_limit_bytes=_VMEM_LIMIT),
    )
    return jax.jit(call)


def global_avgpool(x):
    B, H, W_, C = x.shape
    out = _avgpool_call(B, H * W_, C)(x.reshape(B, H * W_, C))
    return out.reshape(B, C)


# ----------------------------------------------------------------------------
# Conv dispatch (plain-JAX reshapes only; all compute stays in Pallas kernels)
# ----------------------------------------------------------------------------
def _im2col(x, kh, kw, stride, pad):
    B, H, W_, C = x.shape
    Ho = (H + 2 * pad - kh) // stride + 1
    Wo = (W_ + 2 * pad - kw) // stride + 1
    xp = jnp.pad(x, ((0, 0), (pad, pad), (pad, pad), (0, 0)))
    cols = [xp[:, i:i + stride * Ho:stride, j:j + stride * Wo:stride, :]
            for i in range(kh) for j in range(kw)]
    patches = jnp.stack(cols, axis=3).reshape(B * Ho * Wo, kh * kw * C)
    return patches, Ho, Wo


def conv_bn(x, p, *, stride=1, pad=0, relu=True, residual=None):
    """x: NHWC bf16 (channels may carry zero padding).
    p: {'w': (kh,kw,Cin,Coutp) bf16 (BN-scale folded, Cout padded to >=128),
        'shift': (1,Coutp) f32}."""
    w, shift = p["w"], p["shift"]
    kh, kw, cin_w, cout = w.shape
    cin_x = x.shape[-1]
    if cin_x != cin_w:
        # Upstream Cout padding carries exact-zero channels; extend K with zero weights.
        w = jnp.pad(w, ((0, 0), (0, 0), (0, cin_x - cin_w), (0, 0)))
    B = x.shape[0]
    if kh == 1 and kw == 1:
        xs = x if stride == 1 else x[:, ::stride, ::stride, :]
        Ho, Wo = xs.shape[1], xs.shape[2]
        patches = xs.reshape(B * Ho * Wo, cin_x)
        w2d = w.reshape(cin_x, cout)
    elif kh == 3 and stride == 1 and pad == 1 and residual is None:
        return _conv3x3_s1(x, w, shift, relu)          # implicit im2col, all in VMEM
    else:
        patches, Ho, Wo = _im2col(x, kh, kw, stride, pad)   # conv1 7x7 & stride-2 3x3
        w2d = w.reshape(kh * kw * cin_x, cout)
    res2d = None if residual is None else residual.reshape(B * Ho * Wo, cout)
    out = _gemm_bn_act(patches, w2d, shift, relu, res2d)
    return out.reshape(B, Ho, Wo, cout)


# ----------------------------------------------------------------------------
# Parameters (deterministic synthetic init, PyTorch-default BN stats)
# ----------------------------------------------------------------------------
def _conv_bn_raw(key, kh, kw, cin, cout):
    fan_in = kh * kw * cin
    w = jax.random.normal(key, (kh, kw, cin, cout), jnp.float32) * jnp.sqrt(2.0 / fan_in)
    return dict(w=w,
                gamma=jnp.ones((cout,), jnp.float32),
                beta=jnp.zeros((cout,), jnp.float32),
                mean=jnp.zeros((cout,), jnp.float32),
                var=jnp.ones((cout,), jnp.float32))


def init_resnet50_params(key):
    k0, kb = jax.random.split(key)
    params = dict(conv1=_conv_bn_raw(k0, 7, 7, 3, 64), layers=[])
    inplanes = 64
    for planes, nblocks, stride in zip((64, 128, 256, 512), (3, 4, 6, 3), (1, 2, 2, 2)):
        layer = []
        for b in range(nblocks):
            kb, sub = jax.random.split(kb)
            ks = jax.random.split(sub, 4)
            s = stride if b == 0 else 1
            needs_ds = (s != 1) or (inplanes != planes * 4)
            layer.append(dict(
                conv1=_conv_bn_raw(ks[0], 1, 1, inplanes, planes),
                conv2=_conv_bn_raw(ks[1], 3, 3, planes, planes),
                conv3=_conv_bn_raw(ks[2], 1, 1, planes, planes * 4),
                stride=s,
                downsample=_conv_bn_raw(ks[3], 1, 1, inplanes, planes * 4) if needs_ds else None,
            ))
            inplanes = planes * 4
        params["layers"].append(layer)
    return params


def _fold_bn(p):
    scale = p["gamma"] / jnp.sqrt(p["var"] + _BN_EPS)
    w = (p["w"] * scale).astype(jnp.bfloat16)                 # fold BN scale into weights
    shift = (p["beta"] - p["mean"] * scale).astype(jnp.float32).reshape(1, -1)
    cout = w.shape[-1]
    if cout < _MIN_COUT:
        padn = _MIN_COUT - cout
        # Lane-dense output: padded channels get zero weights & zero shift -> exactly 0
        # after the ReLU epilogue, and are consumed by zero weights downstream.
        w = jnp.pad(w, ((0, 0), (0, 0), (0, 0), (0, padn)))
        shift = jnp.pad(shift, ((0, 0), (0, padn)))
    return dict(w=w, shift=shift)


def prepare_inference_params(raw):
    out = dict(conv1=_fold_bn(raw["conv1"]), layers=[])
    for layer in raw["layers"]:
        blocks = []
        for b in layer:
            blocks.append(dict(
                conv1=_fold_bn(b["conv1"]),
                conv2=_fold_bn(b["conv2"]),
                conv3=_fold_bn(b["conv3"]),
                stride=b["stride"],
                downsample=None if b["downsample"] is None else _fold_bn(b["downsample"]),
            ))
        out["layers"].append(blocks)
    return out


# ----------------------------------------------------------------------------
# Forward pass (== nn.Sequential(*resnet50.children()[:-1]) then view(B, -1))
# ----------------------------------------------------------------------------
def bottleneck_forward(x, p):
    if p["downsample"] is not None:
        identity = conv_bn(x, p["downsample"], stride=p["stride"], pad=0, relu=False)
    else:
        identity = x
    out = conv_bn(x, p["conv1"], stride=1, pad=0, relu=True)
    out = conv_bn(out, p["conv2"], stride=p["stride"], pad=1, relu=True)
    # residual add + ReLU fused into the conv3 GEMM epilogue
    out = conv_bn(out, p["conv3"], stride=1, pad=0, relu=True, residual=identity)
    return out


def resnet50_feature_extractor(params, x_nchw):
    x = jnp.transpose(x_nchw, (0, 2, 3, 1)).astype(jnp.bfloat16)   # NCHW -> NHWC, bf16
    x = conv_bn(x, params["conv1"], stride=2, pad=3, relu=True)    # conv1 + bn1 + relu
    x = maxpool_3x3_s2(x)                                          # maxpool 3x3/s2
    for layer in params["layers"]:                                 # layer1..layer4
        for block in layer:
            x = bottleneck_forward(x, block)
    return global_avgpool(x)                                       # avgpool + flatten -> (B, 2048) f32


if __name__ == "__main__":
    key = jax.random.PRNGKey(0)
    pkey, xkey = jax.random.split(key)
    raw = init_resnet50_params(pkey)
    params = prepare_inference_params(raw)
    # Small-but-valid input, PyTorch convention NCHW: (B=2, C=3, H=64, W=64)
    x = jax.random.normal(xkey, (2, 3, 64, 64), jnp.float32)
    feats = resnet50_feature_extractor(params, x)
    feats = jax.block_until_ready(feats)
    assert feats.shape == (2, 2048), feats.shape
    assert bool(jnp.all(jnp.isfinite(feats)))
    print("KERNEL_OK")
</pallas_src>

<mosaic_0001>
module attributes {stable_mosaic.version = 11 : i64} {
  func.func @kernel(%arg0: i32, %arg1: i32, %arg2: memref<1024x147xbf16, #tpu.memory_space<vmem>>, %arg3: memref<147x128xbf16, #tpu.memory_space<vmem>>, %arg4: memref<1x128xf32, #tpu.memory_space<vmem>>, %arg5: memref<1024x128xbf16, #tpu.memory_space<vmem>>) attributes {dimension_semantics = [#tpu.dimension_semantics<parallel>, #tpu.dimension_semantics<parallel>], iteration_bounds = array<i64: 2, 1>, scalar_prefetch = 0 : i64, scratch_operands = 0 : i64, tpu.core_type = #tpu.core_type<tc>, window_params = [{transform_indices = @transform_0, window_bounds = array<i64: 1024, 147>}, {transform_indices = @transform_1, window_bounds = array<i64: 147, 128>}, {transform_indices = @transform_2, window_bounds = array<i64: 1, 128>}, {transform_indices = @transform_3, window_bounds = array<i64: 1024, 128>}]} {
    %c0 = arith.constant 0 : index
    %c0_0 = arith.constant 0 : index
    %0 = vector.load %arg2[%c0, %c0_0] : memref<1024x147xbf16, #tpu.memory_space<vmem>>, vector<1024x147xbf16>
    %c0_1 = arith.constant 0 : index
    %c0_2 = arith.constant 0 : index
    %1 = vector.load %arg3[%c0_1, %c0_2] : memref<147x128xbf16, #tpu.memory_space<vmem>>, vector<147x128xbf16>
    %cst = arith.constant dense<0.000000e+00> : vector<1024x128xf32>
    %2 = tpu.matmul %0, %1, %cst {dimension_numbers = #tpu.dot_dimension_numbers<[1], [0], [0], [1], [0, 0, 1, 1], [], []>} : vector<1024x147xbf16>, vector<147x128xbf16>, vector<1024x128xf32> -> vector<1024x128xf32>
    %c0_3 = arith.constant 0 : index
    %c0_4 = arith.constant 0 : index
    %3 = vector.load %arg4[%c0_3, %c0_4] : memref<1x128xf32, #tpu.memory_space<vmem>>, vector<1x128xf32>
    %4 = vector.broadcast %3 : vector<1x128xf32> to vector<1024x128xf32>
    %5 = arith.addf %2, %4 : vector<1024x128xf32>
    %cst_5 = arith.constant 0.000000e+00 : f32
    %6 = vector.broadcast %cst_5 : f32 to vector<1024x128xf32>
    %7 = arith.maximumf %5, %6 : vector<1024x128xf32>
    %8 = arith.truncf %7 : vector<1024x128xf32> to vector<1024x128xbf16>
    %c0_6 = arith.constant 0 : index
    %c0_7 = arith.constant 0 : index
    %9 = vector.load %arg5[%c0_6, %c0_7] : memref<1024x128xbf16, #tpu.memory_space<vmem>>, vector<1024x128xbf16>
    tpu.vector_store %arg5[%c0_6, %c0_7], %8 {strides = array<i32>} : memref<1024x128xbf16, #tpu.memory_space<vmem>>, vector<1024x128xbf16>,
    return
  }
  func.func @transform_0(%arg0: i32, %arg1: i32) -> (i32, i32) {
    %c0_i32 = arith.constant 0 : i32
    %c0_i32_0 = arith.constant 0 : i32
    return %arg0, %c0_i32 : i32, i32
  }
  func.func @transform_1(%arg0: i32, %arg1: i32) -> (i32, i32) {
    %c0_i32 = arith.constant 0 : i32
    %c0_i32_0 = arith.constant 0 : i32
    return %c0_i32, %arg1 : i32, i32
  }
  func.func @transform_2(%arg0: i32, %arg1: i32) -> (i32, i32) {
    %c0_i32 = arith.constant 0 : i32
    %c0_i32_0 = arith.constant 0 : i32
    return %c0_i32, %arg1 : i32, i32
  }
  func.func @transform_3(%arg0: i32, %arg1: i32) -> (i32, i32) {
    %c0_i32 = arith.constant 0 : i32
    return %arg0, %arg1 : i32, i32
  }
}

</mosaic_0001>

<llo_original>
// kernel: tpu_custom_call.1
$region0: #{tpu_custom_call.1}
  #allocation0 [shape = 'u32[]', space=smem, size = 0x4, offset = 0x4, fixed_abs, tag = 'smem constant byte address 0x4 - core index']
  #allocation1 [shape = 'u32[144,128]{1,0:T(1,128)}', space=vmem, size = 0x12000, scoped, tag = 'internal scratch']
  %s0 = inlined_call_operand.hbm [shape: bf16[2048,147], index: 0, kind: input, shape index: {}]
  %s1 = inlined_call_operand.hbm [shape: bf16[147,128], index: 1, kind: input, shape index: {}]
  %s2 = inlined_call_operand.hbm [shape: f32[1,128], index: 2, kind: input, shape index: {}]
  %s3 = inlined_call_operand.hbm [shape: bf16[2048,128], index: 3, kind: output, shape index: {}]
  %s4 = sld [smem:[#allocation0]]
  $region57: #{tpu_custom_call.1} parent=0
    _
  %s6 = ssub.s32 1, %s4
  %s7 = scalar_select 0, %s6, %s4
  $region1: #{tpu_custom_call.1} parent=0
    #allocation2 [shape = 'u8[1048576]{0}', space=vmem, size = 0x100000, scoped, tag = 'input window, operand 0']
    #allocation3 [shape = 's32[2]{0}', space=sflag, size = 0x8, scoped, tag = 'scoped memory for tpu_custom_call.1']
    #allocation4 [shape = 's32[2]{0}', space=sflag, size = 0x8, scoped, tag = 'scoped memory for tpu_custom_call.1']
    #allocation5 [shape = 'u8[38912]{0}', space=vmem, size = 0x9800, scoped, tag = 'input window, operand 1, single buffered']
    #allocation6 [shape = 's32[1]{0}', space=sflag, size = 0x4, scoped, tag = 'scoped memory for tpu_custom_call.1']
    #allocation7 [shape = 'u8[512]{0}', space=vmem, size = 0x400, scoped, tag = 'input window, operand 2, single buffered']
    #allocation8 [shape = 'u8[524288]{0}', space=vmem, size = 0x80000, scoped, tag = 'output window, operand 0']
    %8 = vsyncpa [#allocation3], 0
    %s9 = scalar_lea.sflag [#allocation3], 1
    %10 = vsyncpa %s9, 0
    %11 = vsyncpa [#allocation6], 0
    %12 = vsyncpa [#allocation4], 0
    %s13 = scalar_lea.sflag [#allocation4], 1
    %14 = vsyncpa %s13, 0
    loop: start=0, step=1, limit=4
    $region2: #{tpu_custom_call.1} parent=1 // loop_pre_header
      _
    $region3: #{tpu_custom_call.1} parent=1 // loop_header
      %s16 = sphi 0, %s20
      %p17 = scmp.ge.s32.totalorder %s16, 4
      %s23 = sphi 0, %s35
      %s24 = sphi 0, %s31
      %s25 = sphi 0, %s23
      %s26 = sphi 0, %s24
      %s27 = sphi 0, %s25
      %s28 = sphi 0, %s26
      %s38 = sphi 0, %s40
      %s41 = sphi 0, %s38
      %s42 = sphi 0, %s41
      %s58 = sphi 0, %s42
      %s64 = sphi 0, %s66
      %s67 = sphi 0, %s64
      %s68 = sphi 0, %s67
      %s84 = sphi 0, %s68
      %s90 = sphi 0, %s92
      %s93 = sphi 0, %s90
      %s94 = sphi 0, %s93
      %s110 = sphi 0, %s94
      %s118 = sphi 0, %s120
      %s121 = sphi 0, %s118
      %s122 = sphi 0, %s121
      %s138 = sphi 0, %s122
    $region4: #{tpu_custom_call.1} parent=1 // loop_header_branch
      %19 = sbr.rel (%p17) target = $region8
    $region5: #{tpu_custom_call.1} parent=1 // loop_body
      %s21 = ssub.s32 %s16, 1
      %s22 = ssub.s32 %s16, 2
      %s29 = sadd.s32 1, %s24
      %p30 = scmp.ge.s32.totalorder %s29, 1
      %s31 = scalar_select %p30, 0, %s29
      %s32 = sadd.s32 1, %s23
      %s33 = scalar_select %p30, %s32, %s23
      %p34 = scmp.ge.s32.totalorder %s33, 2
      %s35 = scalar_select %p34, 0, %s33
      %s36 = ssub.s32 %s23, %s35
      %p37 = scmp.eq.s32.totalorder %s36, 0
      %s39 = sadd.s32 %s38, 1
      %s40 = scalar_select %p37, %s38, %s39
      %p43 = pneg %p37
      %p44 = scmp.eq.s32.totalorder %s16, 1
      %p45 = por %p43, %p44
      %p46 = scmp.ne.s32.totalorder %s38, %s41
      %p47 = scmp.eq.s32.totalorder %s16, 0
      %p48 = por %p46, %p47
      %p49 = scmp.ne.s32.totalorder %s38, %s41
      %p50 = scmp.eq.s32.totalorder %s21, 1
      %p51 = por %p49, %p50
      %p52 = scmp.ne.s32.totalorder %s41, %s42
      %p53 = scmp.eq.s32.totalorder %s21, 0
      %p54 = por %p52, %p53
      %p55 = scmp.ne.s32.totalorder %s41, %s42
      %p56 = scmp.eq.s32.totalorder %s22, 1
      %p57 = por %p55, %p56
      %p59 = scmp.ne.s32.totalorder %s42, %s58
      %p60 = scmp.eq.s32.totalorder %s22, 0
      %p61 = por %p59, %p60
      %s62 = ssub.s32 %s24, %s31
      %p63 = scmp.eq.s32.totalorder %s62, 0
      %s65 = sadd.s32 %s64, 1
      %s66 = scalar_select %p63, %s64, %s65
      %p69 = pneg %p63
      %p70 = scmp.eq.s32.totalorder %s16, 1
      %p71 = por %p69, %p70
      %p72 = scmp.ne.s32.totalorder %s64, %s67
      %p73 = scmp.eq.s32.totalorder %s16, 0
      %p74 = por %p72, %p73
      %p75 = scmp.ne.s32.totalorder %s64, %s67
      %p76 = scmp.eq.s32.totalorder %s21, 1
      %p77 = por %p75, %p76
      %p78 = scmp.ne.s32.totalorder %s67, %s68
      %p79 = scmp.eq.s32.totalorder %s21, 0
      %p80 = por %p78, %p79
      %p81 = scmp.ne.s32.totalorder %s67, %s68
      %p82 = scmp.eq.s32.totalorder %s22, 1
      %p83 = por %p81, %p82
      %p85 = scmp.ne.s32.totalorder %s68, %s84
      %p86 = scmp.eq.s32.totalorder %s22, 0
      %p87 = por %p85, %p86
      %s88 = ssub.s32 %s24, %s31
      %p89 = scmp.eq.s32.totalorder %s88, 0
      %s91 = sadd.s32 %s90, 1
      %s92 = scalar_select %p89, %s90, %s91
      %p95 = pneg %p89
      %p96 = scmp.eq.s32.totalorder %s16, 1
      %p97 = por %p95, %p96
      %p98 = scmp.ne.s32.totalorder %s90, %s93
      %p99 = scmp.eq.s32.totalorder %s16, 0
      %p100 = por %p98, %p99
      %p101 = scmp.ne.s32.totalorder %s90, %s93
      %p102 = scmp.eq.s32.totalorder %s21, 1
      %p103 = por %p101, %p102
      %p104 = scmp.ne.s32.totalorder %s93, %s94
      %p105 = scmp.eq.s32.totalorder %s21, 0
      %p106 = por %p104, %p105
      %p107 = scmp.ne.s32.totalorder %s93, %s94
      %p108 = scmp.eq.s32.totalorder %s22, 1
      %p109 = por %p107, %p108
      %p111 = scmp.ne.s32.totalorder %s94, %s110
      %p112 = scmp.eq.s32.totalorder %s22, 0
      %p113 = por %p111, %p112
      %s114 = ssub.s32 %s23, %s35
      %s115 = ssub.s32 %s24, %s31
      %s116 = sor.u32 %s114, %s115
      %p117 = scmp.eq.s32.totalorder %s116, 0
      %s119 = sadd.s32 %s118, 1
      %s120 = scalar_select %p117, %s118, %s119
      %p123 = pneg %p117
      %p124 = scmp.eq.s32.totalorder %s16, 1
      %p125 = por %p123, %p124
      %p126 = scmp.ne.s32.totalorder %s118, %s121
      %p127 = scmp.eq.s32.totalorder %s16, 0
      %p128 = por %p126, %p127
      %p129 = scmp.ne.s32.totalorder %s118, %s121
      %p130 = scmp.eq.s32.totalorder %s21, 1
      %p131 = por %p129, %p130
      %p132 = scmp.ne.s32.totalorder %s121, %s122
      %p133 = scmp.eq.s32.totalorder %s21, 0
      %p134 = por %p132, %p133
      %p135 = scmp.ne.s32.totalorder %s121, %s122
      %p136 = scmp.eq.s32.totalorder %s22, 1
      %p137 = por %p135, %p136
      %p139 = scmp.ne.s32.totalorder %s122, %s138
      %p140 = scmp.eq.s32.totalorder %s22, 0
      %p141 = por %p139, %p140
      %p142 = scmp.le.s32.totalorder 1, %s16
      %p143 = scmp.lt.s32.totalorder %s16, 3
      %p144 = pnand %p142, %p143
      %p145 = pneg %p144
      // Predicated region
      $region9: #{tpu_custom_call.1} parent=5 // pred_check
        _
      $region10: #{tpu_custom_call.1} parent=5 // pred_check_branch
        %147 = sbr.rel (%p144) target = $region12
      $region11: #{tpu_custom_call.1} parent=5 // pred_region
        %s148 = ssub.s32 %s16, 1
        // Predicated region
        $region13: #{tpu_custom_call.1} parent=11 // pred_check
          %p149 = pneg %p80
        $region14: #{tpu_custom_call.1} parent=11 // pred_check_branch
          %151 = sbr.rel (%p149) target = $region16
        $region15: #{tpu_custom_call.1} parent=11 // pred_region
          %s153 = ssub.s32 1216, 1216
          %154 = vsyncadd [#allocation6], %s153
          %s155 = smul.addr %s26, 64
          %s156 = scalar_lea.hbm %s1, %s155
          %s157 = sshll.u32 [#allocation5], 4
          %s158 = int_to_ptr.vmem [resolvable:$true] %s157
          %163 = dma.hbm_to_vmem [thread:$0]  %s156, 1216, %s158, [#allocation6], 64, 64, 4
        $region16: #{tpu_custom_call.1} parent=11 // pred_fallthru
          _
        // Predicated region
        $region17: #{tpu_custom_call.1} parent=11 // pred_check
          %p164 = pneg %p106
        $region18: #{tpu_custom_call.1} parent=11 // pred_check_branch
          %166 = sbr.rel (%p164) target = $region20
        $region19: #{tpu_custom_call.1} parent=11 // pred_region
          %s168 = ssub.s32 16, 16
          %169 = vsyncadd [#allocation6], %s168
          %s170 = smul.addr %s26, 16
          %s171 = scalar_lea.hbm %s2, %s170
          %s173 = sshll.u32 [#allocation7], 4
          %s174 = int_to_ptr.vmem [resolvable:$true] %s173
          %176 = dma.hbm_to_vmem [thread:$0]  %s171, 16, %s174, [#allocation6]
        $region20: #{tpu_custom_call.1} parent=11 // pred_fallthru
          _
      $region12: #{tpu_custom_call.1} parent=5 // pred_fallthru
        _
      %p177 = scmp.lt.s32.totalorder %s16, 2
      // Predicated region
      $region21: #{tpu_custom_call.1} parent=5 // pred_check
        %p178 = pneg %p177
      $region22: #{tpu_custom_call.1} parent=5 // pred_check_branch
        %180 = sbr.rel (%p178) target = $region24
      $region23: #{tpu_custom_call.1} parent=5 // pred_region
        // Predicated region
        $region25: #{tpu_custom_call.1} parent=23 // pred_check
          %p181 = pneg %p48
        $region26: #{tpu_custom_call.1} parent=23 // pred_check_branch
          %183 = sbr.rel (%p181) target = $region28
        $region27: #{tpu_custom_call.1} parent=23 // pred_region
          %s184 = sand.u32 %s38, 1
          %s185 = scalar_lea.sflag [#allocation3], %s184
          %s186 = sand.u32 %s38, 1
          %s187 = smul.addr %s186, 1024
          %s188 = scalar_lea.vmem [#allocation2], %s187
          %s189 = smul.u32 128, %s23
          %s191 = ssub.s32 16384, 16384
          %192 = vsyncadd %s185, %s191
          %s193 = smul.addr %s189, 2
          %s194 = smul.addr %s193, 64
          %s195 = scalar_lea.hbm %s0, %s194
          %s196 = sshll.u32 %s188, 4
          %s197 = int_to_ptr.vmem [resolvable:$true] %s196
          %202 = dma.hbm_to_vmem [thread:$0]  %s195, 16384, %s197, %s185, 128, 128, 8
        $region28: #{tpu_custom_call.1} parent=23 // pred_fallthru
          _
      $region24: #{tpu_custom_call.1} parent=5 // pred_fallthru
        _
      %p203 = scmp.le.s32.totalorder 1, %s16
      %p204 = scmp.lt.s32.totalorder %s16, 3
      %p205 = pnand %p203, %p204
      %p206 = pneg %p205
      // Predicated region
      $region29: #{tpu_custom_call.1} parent=5 // pred_check
        _
      $region30: #{tpu_custom_call.1} parent=5 // pred_check_branch
        %208 = sbr.rel (%p205) target = $region32
      $region31: #{tpu_custom_call.1} parent=5 // pred_region
        %s209 = ssub.s32 %s16, 1
        %s210 = sand.u32 %s41, 1
        %s211 = scalar_lea.sflag [#allocation3], %s210
        %s212 = sand.u32 %s41, 1
        %s213 = smul.addr %s212, 1024
        %s214 = scalar_lea.vmem [#allocation2], %s213
        // Predicated region
        $region33: #{tpu_custom_call.1} parent=31 // pred_check
          %p215 = pneg %p54
        $region34: #{tpu_custom_call.1} parent=31 // pred_check_branch
          %217 = sbr.rel (%p215) target = $region36
        $region35: #{tpu_custom_call.1} parent=31 // pred_region
          %218 = dma.done %s211, 16384
        $region36: #{tpu_custom_call.1} parent=31 // pred_fallthru
          _
        // Predicated region
        $region37: #{tpu_custom_call.1} parent=31 // pred_check
          %p219 = pneg %p80
        $region38: #{tpu_custom_call.1} parent=31 // pred_check_branch
          %221 = sbr.rel (%p219) target = $region40
        $region39: #{tpu_custom_call.1} parent=31 // pred_region
          %222 = dma.done [#allocation6], 1216
        $region40: #{tpu_custom_call.1} parent=31 // pred_fallthru
          _
        // Predicated region
        $region41: #{tpu_custom_call.1} parent=31 // pred_check
          %p223 = pneg %p106
        $region42: #{tpu_custom_call.1} parent=31 // pred_check_branch
          %225 = sbr.rel (%p223) target = $region44
        $region43: #{tpu_custom_call.1} parent=31 // pred_region
          %226 = dma.done [#allocation6], 16
        $region44: #{tpu_custom_call.1} parent=31 // pred_fallthru
          _
        %s227 = sand.u32 %s41, 1
        %s228 = scalar_lea.sflag [#allocation3], %s227
        %s229 = sand.u32 %s41, 1
        %s230 = smul.addr %s229, 1024
        %s231 = scalar_lea.vmem [#allocation2], %s230
        %p232 = pneg %p54
        %p233 = pneg %p51
        %p234 = pneg %p80
        %p235 = pneg %p77
        %p236 = pneg %p106
        %p237 = pneg %p103
        %p238 = pneg %p134
        %p239 = pneg %p131
        %s240 = sand.u32 %s121, 1
        %s241 = scalar_lea.sflag [#allocation4], %s240
        %s242 = sand.u32 %s121, 1
        %s243 = smul.addr %s242, 512
        %s244 = scalar_lea.vmem [#allocation8], %s243
        %s245 = smul.u32 128, %s25
        %s246 = smul.u32 128, %s25
        %v248 = vld [vmem:[%s214] sm:$0xff]
        %v249 = vld [vmem:[%s214 + $0x8] sm:$0xff]
        %v250 = vld [vmem:[%s214 + $0x10] sm:$0xff]
        %v251 = vld [vmem:[%s214 + $0x18] sm:$0xff]
        %v252 = vld [vmem:[%s214 + $0x20] sm:$0xff]
        %v253 = vld [vmem:[%s214 + $0x28] sm:$0xff]
        %v254 = vld [vmem:[%s214 + $0x30] sm:$0xff]
        %v255 = vld [vmem:[%s214 + $0x38] sm:$0xff]
        %v256 = vld [vmem:[%s214 + $0x40] sm:$0xff]
        %v257 = vld [vmem:[%s214 + $0x48] sm:$0xff]
        %v258 = vld [vmem:[%s214 + $0x50] sm:$0xff]
        %v259 = vld [vmem:[%s214 + $0x58] sm:$0xff]
        %v260 = vld [vmem:[%s214 + $0x60] sm:$0xff]
        %v261 = vld [vmem:[%s214 + $0x68] sm:$0xff]
        %v262 = vld [vmem:[%s214 + $0x70] sm:$0xff]
        %v263 = vld [vmem:[%s214 + $0x78] sm:$0xff]
        %v264 = vld [vmem:[%s214 + $0x80] sm:$0xff]
        %v265 = vld [vmem:[%s214 + $0x88] sm:$0xff]
        %v266 = vld [vmem:[%s214 + $0x90] sm:$0xff]
        %v267 = vld [vmem:[%s214 + $0x98] sm:$0xff]
        %v268 = vld [vmem:[%s214 + $0xa0] sm:$0xff]
        %v269 = vld [vmem:[%s214 + $0xa8] sm:$0xff]
        %v270 = vld [vmem:[%s214 + $0xb0] sm:$0xff]
        %v271 = vld [vmem:[%s214 + $0xb8] sm:$0xff]
        %v272 = vld [vmem:[%s214 + $0xc0] sm:$0xff]
        %v273 = vld [vmem:[%s214 + $0xc8] sm:$0xff]
        %v274 = vld [vmem:[%s214 + $0xd0] sm:$0xff]
        %v275 = vld [vmem:[%s214 + $0xd8] sm:$0xff]
        %v276 = vld [vmem:[%s214 + $0xe0] sm:$0xff]
        %v277 = vld [vmem:[%s214 + $0xe8] sm:$0xff]
        %v278 = vld [vmem:[%s214 + $0xf0] sm:$0xff]
        %v279 = vld [vmem:[%s214 + $0xf8] sm:$0xff]
        %v280 = vld [vmem:[%s214 + $0x100] sm:$0xff]
        %v281 = vld [vmem:[%s214 + $0x108] sm:$0xff]
        %v282 = vld [vmem:[%s214 + $0x110] sm:$0xff]
        %v283 = vld [vmem:[%s214 + $0x118] sm:$0xff]
        %v284 = vld [vmem:[%s214 + $0x120] sm:$0xff]
        %v285 = vld [vmem:[%s214 + $0x128] sm:$0xff]
        %v286 = vld [vmem:[%s214 + $0x130] sm:$0xff]
        %v287 = vld [vmem:[%s214 + $0x138] sm:$0xff]
        %v288 = vld [vmem:[%s214 + $0x140] sm:$0xff]
        %v289 = vld [vmem:[%s214 + $0x148] sm:$0xff]
        %v290 = vld [vmem:[%s214 + $0x150] sm:$0xff]
        %v291 = vld [vmem:[%s214 + $0x158] sm:$0xff]
        %v292 = vld [vmem:[%s214 + $0x160] sm:$0xff]
        %v293 = vld [vmem:[%s214 + $0x168] sm:$0xff]
        %v294 = vld [vmem:[%s214 + $0x170] sm:$0xff]
        %v295 = vld [vmem:[%s214 + $0x178] sm:$0xff]
        %v296 = vld [vmem:[%s214 + $0x180] sm:$0xff]
        %v297 = vld [vmem:[%s214 + $0x188] sm:$0xff]
        %v298 = vld [vmem:[%s214 + $0x190] sm:$0xff]
        %v299 = vld [vmem:[%s214 + $0x198] sm:$0xff]
        %v300 = vld [vmem:[%s214 + $0x1a0] sm:$0xff]
        %v301 = vld [vmem:[%s214 + $0x1a8] sm:$0xff]
        %v302 = vld [vmem:[%s214 + $0x1b0] sm:$0xff]
        %v303 = vld [vmem:[%s214 + $0x1b8] sm:$0xff]
        %v304 = vld [vmem:[%s214 + $0x1c0] sm:$0xff]
        %v305 = vld [vmem:[%s214 + $0x1c8] sm:$0xff]
        %v306 = vld [vmem:[%s214 + $0x1d0] sm:$0xff]
        %v307 = vld [vmem:[%s214 + $0x1d8] sm:$0xff]
        %v308 = vld [vmem:[%s214 + $0x1e0] sm:$0xff]
        %v309 = vld [vmem:[%s214 + $0x1e8] sm:$0xff]
        %v310 = vld [vmem:[%s214 + $0x1f0] sm:$0xff]
        %v311 = vld [vmem:[%s214 + $0x1f8] sm:$0xff]
        %v312 = vld [vmem:[%s214 + $0x200] sm:$0xff]
        %v313 = vld [vmem:[%s214 + $0x208] sm:$0xff]
        %v314 = vld [vmem:[%s214 + $0x210] sm:$0xff]
        %v315 = vld [vmem:[%s214 + $0x218] sm:$0xff]
        %v316 = vld [vmem:[%s214 + $0x220] sm:$0xff]
        %v317 = vld [vmem:[%s214 + $0x228] sm:$0xff]
        %v318 = vld [vmem:[%s214 + $0x230] sm:$0xff]
        %v319 = vld [vmem:[%s214 + $0x238] sm:$0xff]
        %v320 = vld [vmem:[%s214 + $0x240] sm:$0xff]
        %v321 = vld [vmem:[%s214 + $0x248] sm:$0xff]
        %v322 = vld [vmem:[%s214 + $0x250] sm:$0xff]
        %v323 = vld [vmem:[%s214 + $0x258] sm:$0xff]
        %v324 = vld [vmem:[%s214 + $0x260] sm:$0xff]
        %v325 = vld [vmem:[%s214 + $0x268] sm:$0xff]
        %v326 = vld [vmem:[%s214 + $0x270] sm:$0xff]
        %v327 = vld [vmem:[%s214 + $0x278] sm:$0xff]
        %v328 = vld [vmem:[%s214 + $0x280] sm:$0xff]
        %v329 = vld [vmem:[%s214 + $0x288] sm:$0xff]
        %v330 = vld [vmem:[%s214 + $0x290] sm:$0xff]
        %v331 = vld [vmem:[%s214 + $0x298] sm:$0xff]
        %v332 = vld [vmem:[%s214 + $0x2a0] sm:$0xff]
        %v333 = vld [vmem:[%s214 + $0x2a8] sm:$0xff]
        %v334 = vld [vmem:[%s214 + $0x2b0] sm:$0xff]
        %v335 = vld [vmem:[%s214 + $0x2b8] sm:$0xff]
        %v336 = vld [vmem:[%s214 + $0x2c0] sm:$0xff]
        %v337 = vld [vmem:[%s214 + $0x2c8] sm:$0xff]
        %v338 = vld [vmem:[%s214 + $0x2d0] sm:$0xff]
        %v339 = vld [vmem:[%s214 + $0x2d8] sm:$0xff]
        %v340 = vld [vmem:[%s214 + $0x2e0] sm:$0xff]
        %v341 = vld [vmem:[%s214 + $0x2e8] sm:$0xff]
        %v342 = vld [vmem:[%s214 + $0x2f0] sm:$0xff]
        %v343 = vld [vmem:[%s214 + $0x2f8] sm:$0xff]
        %v344 = vld [vmem:[%s214 + $0x300] sm:$0xff]
        %v345 = vld [vmem:[%s214 + $0x308] sm:$0xff]
        %v346 = vld [vmem:[%s214 + $0x310] sm:$0xff]
        %v347 = vld [vmem:[%s214 + $0x318] sm:$0xff]
        %v348 = vld [vmem:[%s214 + $0x320] sm:$0xff]
        %v349 = vld [vmem:[%s214 + $0x328] sm:$0xff]
        %v350 = vld [vmem:[%s214 + $0x330] sm:$0xff]
        %v351 = vld [vmem:[%s214 + $0x338] sm:$0xff]
        %v352 = vld [vmem:[%s214 + $0x340] sm:$0xff]
        %v353 = vld [vmem:[%s214 + $0x348] sm:$0xff]
        %v354 = vld [vmem:[%s214 + $0x350] sm:$0xff]
        %v355 = vld [vmem:[%s214 + $0x358] sm:$0xff]
        %v356 = vld [vmem:[%s214 + $0x360] sm:$0xff]
        %v357 = vld [vmem:[%s214 + $0x368] sm:$0xff]
        %v358 = vld [vmem:[%s214 + $0x370] sm:$0xff]
        %v359 = vld [vmem:[%s214 + $0x378] sm:$0xff]
        %v360 = vld [vmem:[%s214 + $0x380] sm:$0xff]
        %v361 = vld [vmem:[%s214 + $0x388] sm:$0xff]
        %v362 = vld [vmem:[%s214 + $0x390] sm:$0xff]
        %v363 = vld [vmem:[%s214 + $0x398] sm:$0xff]
        %v364 = vld [vmem:[%s214 + $0x3a0] sm:$0xff]
        %v365 = vld [vmem:[%s214 + $0x3a8] sm:$0xff]
        %v366 = vld [vmem:[%s214 + $0x3b0] sm:$0xff]
        %v367 = vld [vmem:[%s214 + $0x3b8] sm:$0xff]
        %v368 = vld [vmem:[%s214 + $0x3c0] sm:$0xff]
        %v369 = vld [vmem:[%s214 + $0x3c8] sm:$0xff]
        %v370 = vld [vmem:[%s214 + $0x3d0] sm:$0xff]
        %v371 = vld [vmem:[%s214 + $0x3d8] sm:$0xff]
        %v372 = vld [vmem:[%s214 + $0x3e0] sm:$0xff]
        %v373 = vld [vmem:[%s214 + $0x3e8] sm:$0xff]
        %v374 = vld [vmem:[%s214 + $0x3f0] sm:$0xff]
        %v375 = vld [vmem:[%s214 + $0x3f8] sm:$0xff]
        %v376 = vld [vmem:[#allocation5] sm:$0xf]
        %v377 = vld [vmem:[#allocation5 + $0x4] sm:$0xf]
        %v378 = vld [vmem:[#allocation5 + $0x8] sm:$0xf]
        %v379 = vld [vmem:[#allocation5 + $0xc] sm:$0xf]
        %v380 = vld [vmem:[#allocation5 + $0x10] sm:$0xf]
        %v381 = vld [vmem:[#allocation5 + $0x14] sm:$0xf]
        %v382 = vld [vmem:[#allocation5 + $0x18] sm:$0xf]
        %v383 = vld [vmem:[#allocation5 + $0x1c] sm:$0xf]
        %v384 = vld [vmem:[#allocation5 + $0x20] sm:$0xf]
        %v385 = vld [vmem:[#allocation5 + $0x24] sm:$0xf]
        %v386 = vld [vmem:[#allocation5 + $0x28] sm:$0xf]
        %v387 = vld [vmem:[#allocation5 + $0x2c] sm:$0xf]
        %v388 = vld [vmem:[#allocation5 + $0x30] sm:$0xf]
        %v389 = vld [vmem:[#allocation5 + $0x34] sm:$0xf]
        %v390 = vld [vmem:[#allocation5 + $0x38] sm:$0xf]
        %v391 = vld [vmem:[#allocation5 + $0x3c] sm:$0xf]
        %v392 = vld [vmem:[#allocation5 + $0x40] sm:$0xf]
        %v393 = vld [vmem:[#allocation5 + $0x44] sm:$0xf]
        %v394 = vld [vmem:[#allocation5 + $0x48] sm:$0x3]
        %v395 = vld [vmem:[#allocation7] sm:$0x1]
        %v397 = vlaneseq
        %v398 = vshrl.u32 %v397, 7
        %v399 = vsub.s32 0, %v398
        %v400 = vrot.slane %v395, %v399
        %v530 = vunpack.c.l.b16 %v248
        %v531 = vunpack.c.h.b16 %v248
        %v532 = vunpack.c.l.b16 %v249
        %v533 = vunpack.c.h.b16 %v249
        %v534 = vunpack.c.l.b16 %v250
        %v535 = vunpack.c.h.b16 %v250
        %v536 = vunpack.c.l.b16 %v251
        %v537 = vunpack.c.h.b16 %v251
        %v538 = vunpack.c.l.b16 %v252
        %v539 = vunpack.c.h.b16 %v252
        %v540 = vunpack.c.l.b16 %v253
        %v541 = vunpack.c.h.b16 %v253
        %v542 = vunpack.c.l.b16 %v254
        %v543 = vunpack.c.h.b16 %v254
        %v544 = vunpack.c.l.b16 %v255
        %v545 = vunpack.c.h.b16 %v255
        %v546 = vunpack.c.l.b16 %v256
        %v547 = vunpack.c.h.b16 %v256
        %v548 = vunpack.c.l.b16 %v257
        %v549 = vunpack.c.h.b16 %v257
        %v550 = vunpack.c.l.b16 %v258
        %v551 = vunpack.c.h.b16 %v258
        %v552 = vunpack.c.l.b16 %v259
        %v553 = vunpack.c.h.b16 %v259
        %v554 = vunpack.c.l.b16 %v260
        %v555 = vunpack.c.h.b16 %v260
        %v556 = vunpack.c.l.b16 %v261
        %v557 = vunpack.c.h.b16 %v261
        %v558 = vunpack.c.l.b16 %v262
        %v559 = vunpack.c.h.b16 %v262
        %v560 = vunpack.c.l.b16 %v263
        %v561 = vunpack.c.h.b16 %v263
        %v562 = vunpack.c.l.b16 %v264
        %v563 = vunpack.c.h.b16 %v264
        %v564 = vunpack.c.l.b16 %v265
        %v565 = vunpack.c.h.b16 %v265
        %v566 = vunpack.c.l.b16 %v266
        %v567 = vunpack.c.h.b16 %v266
        %v568 = vunpack.c.l.b16 %v267
        %v569 = vunpack.c.h.b16 %v267
        %v570 = vunpack.c.l.b16 %v268
        %v571 = vunpack.c.h.b16 %v268
        %v572 = vunpack.c.l.b16 %v269
        %v573 = vunpack.c.h.b16 %v269
        %v574 = vunpack.c.l.b16 %v270
        %v575 = vunpack.c.h.b16 %v270
        %v576 = vunpack.c.l.b16 %v271
        %v577 = vunpack.c.h.b16 %v271
        %v578 = vunpack.c.l.b16 %v272
        %v579 = vunpack.c.h.b16 %v272
        %v580 = vunpack.c.l.b16 %v273
        %v581 = vunpack.c.h.b16 %v273
        %v582 = vunpack.c.l.b16 %v274
        %v583 = vunpack.c.h.b16 %v274
        %v584 = vunpack.c.l.b16 %v275
        %v585 = vunpack.c.h.b16 %v275
        %v586 = vunpack.c.l.b16 %v276
        %v587 = vunpack.c.h.b16 %v276
        %v588 = vunpack.c.l.b16 %v277
        %v589 = vunpack.c.h.b16 %v277
        %v590 = vunpack.c.l.b16 %v278
        %v591 = vunpack.c.h.b16 %v278
        %v592 = vunpack.c.l.b16 %v279
        %v593 = vunpack.c.h.b16 %v279
        %v594 = vunpack.c.l.b16 %v280
        %v595 = vunpack.c.h.b16 %v280
        %v596 = vunpack.c.l.b16 %v281
        %v597 = vunpack.c.h.b16 %v281
        %v598 = vunpack.c.l.b16 %v282
        %v599 = vunpack.c.h.b16 %v282
        %v600 = vunpack.c.l.b16 %v283
        %v601 = vunpack.c.h.b16 %v283
        %v602 = vunpack.c.l.b16 %v284
        %v603 = vunpack.c.h.b16 %v284
        %v604 = vunpack.c.l.b16 %v285
        %v605 = vunpack.c.h.b16 %v285
        %v606 = vunpack.c.l.b16 %v286
        %v607 = vunpack.c.h.b16 %v286
        %v608 = vunpack.c.l.b16 %v287
        %v609 = vunpack.c.h.b16 %v287
        %v610 = vunpack.c.l.b16 %v288
        %v611 = vunpack.c.h.b16 %v288
        %v612 = vunpack.c.l.b16 %v289
        %v613 = vunpack.c.h.b16 %v289
        %v614 = vunpack.c.l.b16 %v290
        %v615 = vunpack.c.h.b16 %v290
        %v616 = vunpack.c.l.b16 %v291
        %v617 = vunpack.c.h.b16 %v291
        %v618 = vunpack.c.l.b16 %v292
        %v619 = vunpack.c.h.b16 %v292
        %v620 = vunpack.c.l.b16 %v293
        %v621 = vunpack.c.h.b16 %v293
        %v622 = vunpack.c.l.b16 %v294
        %v623 = vunpack.c.h.b16 %v294
        %v624 = vunpack.c.l.b16 %v295
        %v625 = vunpack.c.h.b16 %v295
        %v626 = vunpack.c.l.b16 %v296
        %v627 = vunpack.c.h.b16 %v296
        %v628 = vunpack.c.l.b16 %v297
        %v629 = vunpack.c.h.b16 %v297
        %v630 = vunpack.c.l.b16 %v298
        %v631 = vunpack.c.h.b16 %v298
        %v632 = vunpack.c.l.b16 %v299
        %v633 = vunpack.c.h.b16 %v299
        %v634 = vunpack.c.l.b16 %v300
        %v635 = vunpack.c.h.b16 %v300
        %v636 = vunpack.c.l.b16 %v301
        %v637 = vunpack.c.h.b16 %v301
        %v638 = vunpack.c.l.b16 %v302
        %v639 = vunpack.c.h.b16 %v302
        %v640 = vunpack.c.l.b16 %v303
        %v641 = vunpack.c.h.b16 %v303
        %v642 = vunpack.c.l.b16 %v304
        %v643 = vunpack.c.h.b16 %v304
        %v644 = vunpack.c.l.b16 %v305
        %v645 = vunpack.c.h.b16 %v305
        %v646 = vunpack.c.l.b16 %v306
        %v647 = vunpack.c.h.b16 %v306
        %v648 = vunpack.c.l.b16 %v307
        %v649 = vunpack.c.h.b16 %v307
        %v650 = vunpack.c.l.b16 %v308
        %v651 = vunpack.c.h.b16 %v308
        %v652 = vunpack.c.l.b16 %v309
        %v653 = vunpack.c.h.b16 %v309
        %v654 = vunpack.c.l.b16 %v310
        %v655 = vunpack.c.h.b16 %v310
        %v656 = vunpack.c.l.b16 %v311
        %v657 = vunpack.c.h.b16 %v311
        %v658 = vunpack.c.l.b16 %v312
        %v659 = vunpack.c.h.b16 %v312
        %v660 = vunpack.c.l.b16 %v313
        %v661 = vunpack.c.h.b16 %v313
        %v662 = vunpack.c.l.b16 %v314
        %v663 = vunpack.c.h.b16 %v314
        %v664 = vunpack.c.l.b16 %v315
        %v665 = vunpack.c.h.b16 %v315
        %v666 = vunpack.c.l.b16 %v316
        %v667 = vunpack.c.h.b16 %v316
        %v668 = vunpack.c.l.b16 %v317
        %v669 = vunpack.c.h.b16 %v317
        %v670 = vunpack.c.l.b16 %v318
        %v671 = vunpack.c.h.b16 %v318
        %v672 = vunpack.c.l.b16 %v319
        %v673 = vunpack.c.h.b16 %v319
        %v674 = vunpack.c.l.b16 %v320
        %v675 = vunpack.c.h.b16 %v320
        %v676 = vunpack.c.l.b16 %v321
        %v677 = vunpack.c.h.b16 %v321
        %v678 = vunpack.c.l.b16 %v322
        %v679 = vunpack.c.h.b16 %v322
        %v680 = vunpack.c.l.b16 %v323
        %v681 = vunpack.c.h.b16 %v323
        %v682 = vunpack.c.l.b16 %v324
        %v683 = vunpack.c.h.b16 %v324
        %v684 = vunpack.c.l.b16 %v325
        %v685 = vunpack.c.h.b16 %v325
        %v686 = vunpack.c.l.b16 %v326
        %v687 = vunpack.c.h.b16 %v326
        %v688 = vunpack.c.l.b16 %v327
        %v689 = vunpack.c.h.b16 %v327
        %v690 = vunpack.c.l.b16 %v328
        %v691 = vunpack.c.h.b16 %v328
        %v692 = vunpack.c.l.b16 %v329
        %v693 = vunpack.c.h.b16 %v329
        %v694 = vunpack.c.l.b16 %v330
        %v695 = vunpack.c.h.b16 %v330
        %v696 = vunpack.c.l.b16 %v331
        %v697 = vunpack.c.h.b16 %v331
        %v698 = vunpack.c.l.b16 %v332
        %v699 = vunpack.c.h.b16 %v332
        %v700 = vunpack.c.l.b16 %v333
        %v701 = vunpack.c.h.b16 %v333
        %v702 = vunpack.c.l.b16 %v334
        %v703 = vunpack.c.h.b16 %v334
        %v704 = vunpack.c.l.b16 %v335
        %v705 = vunpack.c.h.b16 %v335
        %v706 = vunpack.c.l.b16 %v336
        %v707 = vunpack.c.h.b16 %v336
        %v708 = vunpack.c.l.b16 %v337
        %v709 = vunpack.c.h.b16 %v337
        %v710 = vunpack.c.l.b16 %v338
        %v711 = vunpack.c.h.b16 %v338
        %v712 = vunpack.c.l.b16 %v339
        %v713 = vunpack.c.h.b16 %v339
        %v714 = vunpack.c.l.b16 %v340
        %v715 = vunpack.c.h.b16 %v340
        %v716 = vunpack.c.l.b16 %v341
        %v717 = vunpack.c.h.b16 %v341
        %v718 = vunpack.c.l.b16 %v342
        %v719 = vunpack.c.h.b16 %v342
        %v720 = vunpack.c.l.b16 %v343
        %v721 = vunpack.c.h.b16 %v343
        %v722 = vunpack.c.l.b16 %v344
        %v723 = vunpack.c.h.b16 %v344
        %v724 = vunpack.c.l.b16 %v345
        %v725 = vunpack.c.h.b16 %v345
        %v726 = vunpack.c.l.b16 %v346
        %v727 = vunpack.c.h.b16 %v346
        %v728 = vunpack.c.l.b16 %v347
        %v729 = vunpack.c.h.b16 %v347
        %v730 = vunpack.c.l.b16 %v348
        %v731 = vunpack.c.h.b16 %v348
        %v732 = vunpack.c.l.b16 %v349
        %v733 = vunpack.c.h.b16 %v349
        %v734 = vunpack.c.l.b16 %v350
        %v735 = vunpack.c.h.b16 %v350
        %v736 = vunpack.c.l.b16 %v351
        %v737 = vunpack.c.h.b16 %v351
        %v738 = vunpack.c.l.b16 %v352
        %v739 = vunpack.c.h.b16 %v352
        %v740 = vunpack.c.l.b16 %v353
        %v741 = vunpack.c.h.b16 %v353
        %v742 = vunpack.c.l.b16 %v354
        %v743 = vunpack.c.h.b16 %v354
        %v744 = vunpack.c.l.b16 %v355
        %v745 = vunpack.c.h.b16 %v355
        %v746 = vunpack.c.l.b16 %v356
        %v747 = vunpack.c.h.b16 %v356
        %v748 = vunpack.c.l.b16 %v357
        %v749 = vunpack.c.h.b16 %v357
        %v750 = vunpack.c.l.b16 %v358
        %v751 = vunpack.c.h.b16 %v358
        %v752 = vunpack.c.l.b16 %v359
        %v753 = vunpack.c.h.b16 %v359
        %v754 = vunpack.c.l.b16 %v360
        %v755 = vunpack.c.h.b16 %v360
        %v756 = vunpack.c.l.b16 %v361
        %v757 = vunpack.c.h.b16 %v361
        %v758 = vunpack.c.l.b16 %v362
        %v759 = vunpack.c.h.b16 %v362
        %v760 = vunpack.c.l.b16 %v363
        %v761 = vunpack.c.h.b16 %v363
        %v762 = vunpack.c.l.b16 %v364
        %v763 = vunpack.c.h.b16 %v364
        %v764 = vunpack.c.l.b16 %v365
        %v765 = vunpack.c.h.b16 %v365
        %v766 = vunpack.c.l.b16 %v366
        %v767 = vunpack.c.h.b16 %v366
        %v768 = vunpack.c.l.b16 %v367
        %v769 = vunpack.c.h.b16 %v367
        %v770 = vunpack.c.l.b16 %v368
        %v771 = vunpack.c.h.b16 %v368
        %v772 = vunpack.c.l.b16 %v369
        %v773 = vunpack.c.h.b16 %v369
        %v774 = vunpack.c.l.b16 %v370
        %v775 = vunpack.c.h.b16 %v370
        %v776 = vunpack.c.l.b16 %v371
        %v777 = vunpack.c.h.b16 %v371
        %v778 = vunpack.c.l.b16 %v372
        %v779 = vunpack.c.h.b16 %v372
        %v780 = vunpack.c.l.b16 %v373
        %v781 = vunpack.c.h.b16 %v373
        %v782 = vunpack.c.l.b16 %v374
        %v783 = vunpack.c.h.b16 %v374
        %v784 = vunpack.c.l.b16 %v375
        %v785 = vunpack.c.h.b16 %v375
        %v786 = vpack.c.b16 %v532, %v530
        %v787 = vpack.c.b16 %v533, %v531
        %v788 = vpack.c.b16 %v536, %v534
        %v789 = vpack.c.b16 %v537, %v535
        %v790 = vpack.c.b16 %v540, %v538
        %v791 = vpack.c.b16 %v541, %v539
        %v792 = vpack.c.b16 %v544, %v542
        %v793 = vpack.c.b16 %v545, %v543
        %v794 = vpack.c.b16 %v548, %v546
        %v795 = vpack.c.b16 %v549, %v547
        %v796 = vpack.c.b16 %v552, %v550
        %v797 = vpack.c.b16 %v553, %v551
        %v798 = vpack.c.b16 %v556, %v554
        %v799 = vpack.c.b16 %v557, %v555
        %v800 = vpack.c.b16 %v560, %v558
        %v801 = vpack.c.b16 %v561, %v559
        %v802 = vpack.c.b16 %v564, %v562
        %v803 = vpack.c.b16 %v565, %v563
        %v804 = vpack.c.b16 %v568, %v566
        %v805 = vpack.c.b16 %v569, %v567
        %v806 = vpack.c.b16 %v572, %v570
        %v807 = vpack.c.b16 %v573, %v571
        %v808 = vpack.c.b16 %v576, %v574
        %v809 = vpack.c.b16 %v577, %v575
        %v810 = vpack.c.b16 %v580, %v578
        %v811 = vpack.c.b16 %v581, %v579
        %v812 = vpack.c.b16 %v584, %v582
        %v813 = vpack.c.b16 %v585, %v583
        %v814 = vpack.c.b16 %v588, %v586
        %v815 = vpack.c.b16 %v589, %v587
        %v816 = vpack.c.b16 %v592, %v590
        %v817 = vpack.c.b16 %v593, %v591
        %v818 = vpack.c.b16 %v596, %v594
        %v819 = vpack.c.b16 %v597, %v595
        %v820 = vpack.c.b16 %v600, %v598
        %v821 = vpack.c.b16 %v601, %v599
        %v822 = vpack.c.b16 %v604, %v602
        %v823 = vpack.c.b16 %v605, %v603
        %v824 = vpack.c.b16 %v608, %v606
        %v825 = vpack.c.b16 %v609, %v607
        %v826 = vpack.c.b16 %v612, %v610
        %v827 = vpack.c.b16 %v613, %v611
        %v828 = vpack.c.b16 %v616, %v614
        %v829 = vpack.c.b16 %v617, %v615
        %v830 = vpack.c.b16 %v620, %v618
        %v831 = vpack.c.b16 %v621, %v619
        %v832 = vpack.c.b16 %v624, %v622
        %v833 = vpack.c.b16 %v625, %v623
        %v834 = vpack.c.b16 %v628, %v626
        %v835 = vpack.c.b16 %v629, %v627
        %v836 = vpack.c.b16 %v632, %v630
        %v837 = vpack.c.b16 %v633, %v631
        %v838 = vpack.c.b16 %v636, %v634
        %v839 = vpack.c.b16 %v637, %v635
        %v840 = vpack.c.b16 %v640, %v638
        %v841 = vpack.c.b16 %v641, %v639
        %v842 = vpack.c.b16 %v644, %v642
        %v843 = vpack.c.b16 %v645, %v643
        %v844 = vpack.c.b16 %v648, %v646
        %v845 = vpack.c.b16 %v649, %v647
        %v846 = vpack.c.b16 %v652, %v650
        %v847 = vpack.c.b16 %v653, %v651
        %v848 = vpack.c.b16 %v656, %v654
        %v849 = vpack.c.b16 %v657, %v655
        %v850 = vpack.c.b16 %v660, %v658
        %v851 = vpack.c.b16 %v661, %v659
        %v852 = vpack.c.b16 %v664, %v662
        %v853 = vpack.c.b16 %v665, %v663
        %v854 = vpack.c.b16 %v668, %v666
        %v855 = vpack.c.b16 %v669, %v667
        %v856 = vpack.c.b16 %v672, %v670
        %v857 = vpack.c.b16 %v673, %v671
        %v858 = vpack.c.b16 %v676, %v674
        %v859 = vpack.c.b16 %v677, %v675
        %v860 = vpack.c.b16 %v680, %v678
        %v861 = vpack.c.b16 %v681, %v679
        %v862 = vpack.c.b16 %v684, %v682
        %v863 = vpack.c.b16 %v685, %v683
        %v864 = vpack.c.b16 %v688, %v686
        %v865 = vpack.c.b16 %v689, %v687
        %v866 = vpack.c.b16 %v692, %v690
        %v867 = vpack.c.b16 %v693, %v691
        %v868 = vpack.c.b16 %v696, %v694
        %v869 = vpack.c.b16 %v697, %v695
        %v870 = vpack.c.b16 %v700, %v698
        %v871 = vpack.c.b16 %v701, %v699
        %v872 = vpack.c.b16 %v704, %v702
        %v873 = vpack.c.b16 %v705, %v703
        %v874 = vpack.c.b16 %v708, %v706
        %v875 = vpack.c.b16 %v709, %v707
        %v876 = vpack.c.b16 %v712, %v710
        %v877 = vpack.c.b16 %v713, %v711
        %v878 = vpack.c.b16 %v716, %v714
        %v879 = vpack.c.b16 %v717, %v715
        %v880 = vpack.c.b16 %v720, %v718
        %v881 = vpack.c.b16 %v721, %v719
        %v882 = vpack.c.b16 %v724, %v722
        %v883 = vpack.c.b16 %v725, %v723
        %v884 = vpack.c.b16 %v728, %v726
        %v885 = vpack.c.b16 %v729, %v727
        %v886 = vpack.c.b16 %v732, %v730
        %v887 = vpack.c.b16 %v733, %v731
        %v888 = vpack.c.b16 %v736, %v734
        %v889 = vpack.c.b16 %v737, %v735
        %v890 = vpack.c.b16 %v740, %v738
        %v891 = vpack.c.b16 %v741, %v739
        %v892 = vpack.c.b16 %v744, %v742
        %v893 = vpack.c.b16 %v745, %v743
        %v894 = vpack.c.b16 %v748, %v746
        %v895 = vpack.c.b16 %v749, %v747
        %v896 = vpack.c.b16 %v752, %v750
        %v897 = vpack.c.b16 %v753, %v751
        %v898 = vpack.c.b16 %v756, %v754
        %v899 = vpack.c.b16 %v757, %v755
        %v900 = vpack.c.b16 %v760, %v758
        %v901 = vpack.c.b16 %v761, %v759
        %v902 = vpack.c.b16 %v764, %v762
        %v903 = vpack.c.b16 %v765, %v763
        %v904 = vpack.c.b16 %v768, %v766
        %v905 = vpack.c.b16 %v769, %v767
        %v906 = vpack.c.b16 %v772, %v770
        %v907 = vpack.c.b16 %v773, %v771
        %v908 = vpack.c.b16 %v776, %v774
        %v909 = vpack.c.b16 %v777, %v775
        %v910 = vpack.c.b16 %v780, %v778
        %v911 = vpack.c.b16 %v781, %v779
        %v912 = vpack.c.b16 %v784, %v782
        %v913 = vpack.c.b16 %v785, %v783
        %v997 = vunpack.c.l.b16 %v376
        %v998 = vunpack.c.l.b16 %v377
        %v999 = vunpack.c.l.b16 %v378
        %v1000 = vunpack.c.l.b16 %v379
        %v1001 = vunpack.c.l.b16 %v380
        %v1002 = vunpack.c.l.b16 %v381
        %v1003 = vunpack.c.l.b16 %v382
        %v1004 = vunpack.c.l.b16 %v383
        %v1005 = vunpack.c.l.b16 %v384
        %v1006 = vunpack.c.l.b16 %v385
        %v1007 = vunpack.c.l.b16 %v386
        %v1008 = vunpack.c.l.b16 %v387
        %v1009 = vunpack.c.l.b16 %v388
        %v1010 = vunpack.c.l.b16 %v389
        %v1011 = vunpack.c.l.b16 %v390
        %v1012 = vunpack.c.l.b16 %v391
        %v1013 = vunpack.c.l.b16 %v392
        %v1014 = vunpack.c.l.b16 %v393
        %v1015 = vunpack.c.l.b16 %v394
        %v1016 = vpack.c.b16 %v998, %v997
        %v1017 = vpack.c.b16 %v1000, %v999
        %v1018 = vpack.c.b16 %v1002, %v1001
        %v1019 = vpack.c.b16 %v1004, %v1003
        %v1020 = vpack.c.b16 %v1006, %v1005
        %v1021 = vpack.c.b16 %v1008, %v1007
        %v1022 = vpack.c.b16 %v1010, %v1009
        %v1023 = vpack.c.b16 %v1012, %v1011
        %v1024 = vpack.c.b16 %v1014, %v1013
        %v1025 = vpack.c.b16 %v1015, %v1015
        %vm1035 = vcmask 154624
        %v1037 = vsel %vm1035, %v787, 0
        %v1040 = vsel %vm1035, %v789, 0
        %v1043 = vsel %vm1035, %v791, 0
        %v1046 = vsel %vm1035, %v793, 0
        %v1049 = vsel %vm1035, %v795, 0
        %v1052 = vsel %vm1035, %v797, 0
        %v1055 = vsel %vm1035, %v799, 0
        %v1058 = vsel %vm1035, %v801, 0
        %v1061 = vsel %vm1035, %v803, 0
        %v1064 = vsel %vm1035, %v805, 0
        %v1067 = vsel %vm1035, %v807, 0
        %v1070 = vsel %vm1035, %v809, 0
        %v1073 = vsel %vm1035, %v811, 0
        %v1076 = vsel %vm1035, %v813, 0
        %v1079 = vsel %vm1035, %v815, 0
        %v1082 = vsel %vm1035, %v817, 0
        %v1085 = vsel %vm1035, %v819, 0
        %v1088 = vsel %vm1035, %v821, 0
        %v1091 = vsel %vm1035, %v823, 0
        %v1094 = vsel %vm1035, %v825, 0
        %v1097 = vsel %vm1035, %v827, 0
        %v1100 = vsel %vm1035, %v829, 0
        %v1103 = vsel %vm1035, %v831, 0
        %v1106 = vsel %vm1035, %v833, 0
        %v1109 = vsel %vm1035, %v835, 0
        %v1112 = vsel %vm1035, %v837, 0
        %v1115 = vsel %vm1035, %v839, 0
        %v1118 = vsel %vm1035, %v841, 0
        %v1121 = vsel %vm1035, %v843, 0
        %v1124 = vsel %vm1035, %v845, 0
        %v1127 = vsel %vm1035, %v847, 0
        %v1130 = vsel %vm1035, %v849, 0
        %v1133 = vsel %vm1035, %v851, 0
        %v1136 = vsel %vm1035, %v853, 0
        %v1139 = vsel %vm1035, %v855, 0
        %v1142 = vsel %vm1035, %v857, 0
        %v1145 = vsel %vm1035, %v859, 0
        %v1148 = vsel %vm1035, %v861, 0
        %v1151 = vsel %vm1035, %v863, 0
        %v1154 = vsel %vm1035, %v865, 0
        %v1157 = vsel %vm1035, %v867, 0
        %v1160 = vsel %vm1035, %v869, 0
        %v1163 = vsel %vm1035, %v871, 0
        %v1166 = vsel %vm1035, %v873, 0
        %v1169 = vsel %vm1035, %v875, 0
        %v1172 = vsel %vm1035, %v877, 0
        %v1175 = vsel %vm1035, %v879, 0
        %v1178 = vsel %vm1035, %v881, 0
        %v1181 = vsel %vm1035, %v883, 0
        %v1184 = vsel %vm1035, %v885, 0
        %v1187 = vsel %vm1035, %v887, 0
        %v1190 = vsel %vm1035, %v889, 0
        %v1193 = vsel %vm1035, %v891, 0
        %v1196 = vsel %vm1035, %v893, 0
        %v1199 = vsel %vm1035, %v895, 0
        %v1202 = vsel %vm1035, %v897, 0
        %v1205 = vsel %vm1035, %v899, 0
        %v1208 = vsel %vm1035, %v901, 0
        %v1211 = vsel %vm1035, %v903, 0
        %v1214 = vsel %vm1035, %v905, 0
        %v1217 = vsel %vm1035, %v907, 0
        %v1220 = vsel %vm1035, %v909, 0
        %v1223 = vsel %vm1035, %v911, 0
        %v1226 = vsel %vm1035, %v913, 0
        %vm1228 = vcmask 1040384
        %vm1229 = vcmask 1041408
        %v1230 = vsel %vm1228, 4294967295, 65535
        %v1231 = vsel %vm1229, %v1230, 0
        %v1233 = vand.u32 %v1025, %v1231
        %1235 = vmatprep.subr.bf16.mxu0 0
        %1236 = vmatpush1.bf16.msra.mxu0 %v1016
        %1237 = vmatprep.subr.bf16.mxu0 0
        %1238 = vmatpush1.bf16.msra.mxu0 %v1017
        %1239 = vmatprep.subr.bf16.mxu0 0
        %1240 = vmatpush1.bf16.msra.mxu0 %v1018
        %1241 = vmatprep.subr.bf16.mxu0 0
        %1242 = vmatpush1.bf16.msra.mxu0 %v1019
        %1243 = vmatprep.subr.bf16.mxu0 0
        %1244 = vmatpush1.bf16.msra.mxu0 %v1020
        %1245 = vmatprep.subr.bf16.mxu0 0
        %1246 = vmatpush1.bf16.msra.mxu0 %v1021
        %1247 = vmatprep.subr.bf16.mxu0 0
        %1248 = vmatpush1.bf16.msra.mxu0 %v1022
        %1249 = vmatprep.subr.bf16.mxu0 0
        %1250 = vmatpush1.bf16.msra.mxu0 %v1023
        %1251 = vmatprep.subr.bf16.mxu0 0
        %1252 = vmatpush1.bf16.msra.mxu0 %v1024
        %1253 = vmatprep.subr.bf16.mxu0 0
        %1254 = vmatpush1.bf16.msra.mxu0 %v1233
        %1255 = vmatprep.subr.bf16.mxu0 0
        %1256 = vmatpush1.bf16.msra.mxu0 0
        %1257 = vmatprep.subr.bf16.mxu0 0
        %1258 = vmatpush1.bf16.msra.mxu0 0
        %1259 = vmatprep.subr.bf16.mxu0 0
        %1260 = vmatpush1.bf16.msra.mxu0 0
        %1261 = vmatprep.subr.bf16.mxu0 0
        %1262 = vmatpush1.bf16.msra.mxu0 0
        %1263 = vmatprep.subr.bf16.mxu0 0
        %1264 = vmatpush1.bf16.msra.mxu0 0
        %1265 = vmatprep.subr.bf16.mxu0 0
        %1266 = vmatpush1.bf16.msra.mxu0 0
        %1267 = vmatprep.mubr.bf16.mxu0 %v1037
        %1268 = vmatmul.mubr.bf16.gmra.mrb[0].mxu0 %v786
        %v1269 = vpop.f32.mrb[0].mxu0
        %v1270 = vadd.f32 %v400, %v1269
        %v1271 = vpop.f32.mrb[0].mxu0
        %v1272 = vpop.f32.mrb[0].mxu0
        %v1273 = vadd.f32 %v400, %v1272
        %v1274 = vpop.f32.mrb[0].mxu0
        %1275 = vmatprep.mubr.bf16.mxu0 %v1040
        %1276 = vmatmul.mubr.bf16.gmra.mrb[0].mxu0 %v788
        %v1277 = vpop.f32.mrb[0].mxu0
        %v1278 = vadd.f32 %v400, %v1277
        %v1279 = vpop.f32.mrb[0].mxu0
        %v1280 = vpop.f32.mrb[0].mxu0
        %v1281 = vadd.f32 %v400, %v1280
        %v1282 = vpop.f32.mrb[0].mxu0
        %1283 = vmatprep.mubr.bf16.mxu0 %v1043
        %1284 = vmatmul.mubr.bf16.gmra.mrb[0].mxu0 %v790
        %v1285 = vpop.f32.mrb[0].mxu0
        %v1286 = vadd.f32 %v400, %v1285
        %v1287 = vpop.f32.mrb[0].mxu0
        %v1288 = vpop.f32.mrb[0].mxu0
        %v1289 = vadd.f32 %v400, %v1288
        %v1290 = vpop.f32.mrb[0].mxu0
        %1291 = vmatprep.mubr.bf16.mxu0 %v1046
        %1292 = vmatmul.mubr.bf16.gmra.mrb[0].mxu0 %v792
        %v1293 = vpop.f32.mrb[0].mxu0
        %v1294 = vadd.f32 %v400, %v1293
        %v1295 = vpop.f32.mrb[0].mxu0
        %v1296 = vpop.f32.mrb[0].mxu0
        %v1297 = vadd.f32 %v400, %v1296
        %v1298 = vpop.f32.mrb[0].mxu0
        %1299 = vmatprep.mubr.bf16.mxu0 %v1049
        %1300 = vmatmul.mubr.bf16.gmra.mrb[0].mxu0 %v794
        %v1301 = vpop.f32.mrb[0].mxu0
        %v1302 = vadd.f32 %v400, %v1301
        %v1303 = vpop.f32.mrb[0].mxu0
        %v1304 = vpop.f32.mrb[0].mxu0
        %v1305 = vadd.f32 %v400, %v1304
        %v1306 = vpop.f32.mrb[0].mxu0
        %1307 = vmatprep.mubr.bf16.mxu0 %v1052
        %1308 = vmatmul.mubr.bf16.gmra.mrb[0].mxu0 %v796
        %v1309 = vpop.f32.mrb[0].mxu0
        %v1310 = vadd.f32 %v400, %v1309
        %v1311 = vpop.f32.mrb[0].mxu0
        %v1312 = vpop.f32.mrb[0].mxu0
        %v1313 = vadd.f32 %v400, %v1312
        %v1314 = vpop.f32.mrb[0].mxu0
        %1315 = vmatprep.mubr.bf16.mxu0 %v1055
        %1316 = vmatmul.mubr.bf16.gmra.mrb[0].mxu0 %v798
        %v1317 = vpop.f32.mrb[0].mxu0
        %v1318 = vadd.f32 %v400, %v1317
        %v1319 = vpop.f32.mrb[0].mxu0
        %v1320 = vpop.f32.mrb[0].mxu0
        %v1321 = vadd.f32 %v400, %v1320
        %v1322 = vpop.f32.mrb[0].mxu0
        %1323 = vmatprep.mubr.bf16.mxu0 %v1058
        %1324 = vmatmul.mubr.bf16.gmra.mrb[0].mxu0 %v800
        %v1325 = vpop.f32.mrb[0].mxu0
        %v1326 = vadd.f32 %v400, %v1325
        %v1327 = vpop.f32.mrb[0].mxu0
        %v1328 = vpop.f32.mrb[0].mxu0
        %v1329 = vadd.f32 %v400, %v1328
        %v1330 = vpop.f32.mrb[0].mxu0
        %1331 = vmatprep.mubr.bf16.mxu0 %v1061
        %1332 = vmatmul.mubr.bf16.gmra.mrb[0].mxu0 %v802
        %v1333 = vpop.f32.mrb[0].mxu0
        %v1334 = vadd.f32 %v400, %v1333
        %v1335 = vpop.f32.mrb[0].mxu0
        %v1336 = vpop.f32.mrb[0].mxu0
        %v1337 = vadd.f32 %v400, %v1336
        %v1338 = vpop.f32.mrb[0].mxu0
        %1339 = vmatprep.mubr.bf16.mxu0 %v1064
        %1340 = vmatmul.mubr.bf16.gmra.mrb[0].mxu0 %v804
        %v1341 = vpop.f32.mrb[0].mxu0
        %v1342 = vadd.f32 %v400, %v1341
        %v1343 = vpop.f32.mrb[0].mxu0
        %v1344 = vpop.f32.mrb[0].mxu0
        %v1345 = vadd.f32 %v400, %v1344
        %v1346 = vpop.f32.mrb[0].mxu0
        %1347 = vmatprep.mubr.bf16.mxu0 %v1067
        %1348 = vmatmul.mubr.bf16.gmra.mrb[0].mxu0 %v806
        %v1349 = vpop.f32.mrb[0].mxu0
        %v1350 = vadd.f32 %v400, %v1349
        %v1351 = vpop.f32.mrb[0].mxu0
        %v1352 = vpop.f32.mrb[0].mxu0
        %v1353 = vadd.f32 %v400, %v1352
        %v1354 = vpop.f32.mrb[0].mxu0
        %1355 = vmatprep.mubr.bf16.mxu0 %v1070
        %1356 = vmatmul.mubr.bf16.gmra.mrb[0].mxu0 %v808
        %v1357 = vpop.f32.mrb[0].mxu0
        %v1358 = vadd.f32 %v400, %v1357
        %v1359 = vpop.f32.mrb[0].mxu0
        %v1360 = vpop.f32.mrb[0].mxu0
        %v1361 = vadd.f32 %v400, %v1360
        %v1362 = vpop.f32.mrb[0].mxu0
        %1363 = vmatprep.mubr.bf16.mxu0 %v1073
        %1364 = vmatmul.mubr.bf16.gmra.mrb[0].mxu0 %v810
        %v1365 = vpop.f32.mrb[0].mxu0
        %v1366 = vadd.f32 %v400, %v1365
        %v1367 = vpop.f32.mrb[0].mxu0
        %v1368 = vpop.f32.mrb[0].mxu0
        %v1369 = vadd.f32 %v400, %v1368
        %v1370 = vpop.f32.mrb[0].mxu0
        %1371 = vmatprep.mubr.bf16.mxu0 %v1076
        %1372 = vmatmul.mubr.bf16.gmra.mrb[0].mxu0 %v812
        %v1373 = vpop.f32.mrb[0].mxu0
        %v1374 = vadd.f32 %v400, %v1373
        %v1375 = vpop.f32.mrb[0].mxu0
        %v1376 = vpop.f32.mrb[0].mxu0
        %v1377 = vadd.f32 %v400, %v1376
        %v1378 = vpop.f32.mrb[0].mxu0
        %1379 = vmatprep.mubr.bf16.mxu0 %v1079
        %1380 = vmatmul.mubr.bf16.gmra.mrb[0].mxu0 %v814
        %v1381 = vpop.f32.mrb[0].mxu0
        %v1382 = vadd.f32 %v400, %v1381
        %v1383 = vpop.f32.mrb[0].mxu0
        %v1384 = vpop.f32.mrb[0].mxu0
        %v1385 = vadd.f32 %v400, %v1384
        %v1386 = vpop.f32.mrb[0].mxu0
        %1387 = vmatprep.mubr.bf16.mxu0 %v1082
        %1388 = vmatmul.mubr.bf16.gmra.mrb[0].mxu0 %v816
        %v1389 = vpop.f32.mrb[0].mxu0
        %v1390 = vadd.f32 %v400, %v1389
        %v1391 = vpop.f32.mrb[0].mxu0
        %v1392 = vpop.f32.mrb[0].mxu0
        %v1393 = vadd.f32 %v400, %v1392
        %v1394 = vpop.f32.mrb[0].mxu0
        %1395 = vmatprep.mubr.bf16.mxu0 %v1085
        %1396 = vmatmul.mubr.bf16.gmra.mrb[0].mxu0 %v818
        %v1397 = vpop.f32.mrb[0].mxu0
        %v1398 = vadd.f32 %v400, %v1397
        %v1399 = vpop.f32.mrb[0].mxu0
        %v1400 = vpop.f32.mrb[0].mxu0
        %v1401 = vadd.f32 %v400, %v1400
        %v1402 = vpop.f32.mrb[0].mxu0
        %1403 = vmatprep.mubr.bf16.mxu0 %v1088
        %1404 = vmatmul.mubr.bf16.gmra.mrb[0].mxu0 %v820
        %v1405 = vpop.f32.mrb[0].mxu0
        %v1406 = vadd.f32 %v400, %v1405
        %v1407 = vpop.f32.mrb[0].mxu0
        %v1408 = vpop.f32.mrb[0].mxu0
        %v1409 = vadd.f32 %v400, %v1408
        %v1410 = vpop.f32.mrb[0].mxu0
        %1411 = vmatprep.mubr.bf16.mxu0 %v1091
        %1412 = vmatmul.mubr.bf16.gmra.mrb[0].mxu0 %v822
        %v1413 = vpop.f32.mrb[0].mxu0
        %v1414 = vadd.f32 %v400, %v1413
        %v1415 = vpop.f32.mrb[0].mxu0
        %v1416 = vpop.f32.mrb[0].mxu0
        %v1417 = vadd.f32 %v400, %v1416
        %v1418 = vpop.f32.mrb[0].mxu0
        %1419 = vmatprep.mubr.bf16.mxu0 %v1094
        %1420 = vmatmul.mubr.bf16.gmra.mrb[0].mxu0 %v824
        %v1421 = vpop.f32.mrb[0].mxu0
        %v1422 = vadd.f32 %v400, %v1421
        %v1423 = vpop.f32.mrb[0].mxu0
        %v1424 = vpop.f32.mrb[0].mxu0
        %v1425 = vadd.f32 %v400, %v1424
        %v1426 = vpop.f32.mrb[0].mxu0
        %1427 = vmatprep.mubr.bf16.mxu0 %v1097
        %1428 = vmatmul.mubr.bf16.gmra.mrb[0].mxu0 %v826
        %v1429 = vpop.f32.mrb[0].mxu0
        %v1430 = vadd.f32 %v400, %v1429
        %v1431 = vpop.f32.mrb[0].mxu0
        %v1432 = vpop.f32.mrb[0].mxu0
        %v1433 = vadd.f32 %v400, %v1432
        %v1434 = vpop.f32.mrb[0].mxu0
        %1435 = vmatprep.mubr.bf16.mxu0 %v1100
        %1436 = vmatmul.mubr.bf16.gmra.mrb[0].mxu0 %v828
        %v1437 = vpop.f32.mrb[0].mxu0
        %v1438 = vadd.f32 %v400, %v1437
        %v1439 = vpop.f32.mrb[0].mxu0
        %v1440 = vpop.f32.mrb[0].mxu0
        %v1441 = vadd.f32 %v400, %v1440
        %v1442 = vpop.f32.mrb[0].mxu0
        %1443 = vmatprep.mubr.bf16.mxu0 %v1103
        %1444 = vmatmul.mubr.bf16.gmra.mrb[0].mxu0 %v830
        %v1445 = vpop.f32.mrb[0].mxu0
        %v1446 = vadd.f32 %v400, %v1445
        %v1447 = vpop.f32.mrb[0].mxu0
        %v1448 = vpop.f32.mrb[0].mxu0
        %v1449 = vadd.f32 %v400, %v1448
        %v1450 = vpop.f32.mrb[0].mxu0
        %1451 = vmatprep.mubr.bf16.mxu0 %v1106
        %1452 = vmatmul.mubr.bf16.gmra.mrb[0].mxu0 %v832
        %v1453 = vpop.f32.mrb[0].mxu0
        %v1454 = vadd.f32 %v400, %v1453
        %v1455 = vpop.f32.mrb[0].mxu0
        %v1456 = vpop.f32.mrb[0].mxu0
        %v1457 = vadd.f32 %v400, %v1456
        %v1458 = vpop.f32.mrb[0].mxu0
        %1459 = vmatprep.mubr.bf16.mxu0 %v1109
        %1460 = vmatmul.mubr.bf16.gmra.mrb[0].mxu0 %v834
        %v1461 = vpop.f32.mrb[0].mxu0
        %v1462 = vadd.f32 %v400, %v1461
        %v1463 = vpop.f32.mrb[0].mxu0
        %v1464 = vpop.f32.mrb[0].mxu0
        %v1465 = vadd.f32 %v400, %v1464
        %v1466 = vpop.f32.mrb[0].mxu0
        %1467 = vmatprep.mubr.bf16.mxu0 %v1112
        %1468 = vmatmul.mubr.bf16.gmra.mrb[0].mxu0 %v836
        %v1469 = vpop.f32.mrb[0].mxu0
        %v1470 = vadd.f32 %v400, %v1469
        %v1471 = vpop.f32.mrb[0].mxu0
        %v1472 = vpop.f32.mrb[0].mxu0
        %v1473 = vadd.f32 %v400, %v1472
        %v1474 = vpop.f32.mrb[0].mxu0
        %1475 = vmatprep.mubr.bf16.mxu0 %v1115
        %1476 = vmatmul.mubr.bf16.gmra.mrb[0].mxu0 %v838
        %v1477 = vpop.f32.mrb[0].mxu0
        %v1478 = vadd.f32 %v400, %v1477
        %v1479 = vpop.f32.mrb[0].mxu0
        %v1480 = vpop.f32.mrb[0].mxu0
        %v1481 = vadd.f32 %v400, %v1480
        %v1482 = vpop.f32.mrb[0].mxu0
        %1483 = vmatprep.mubr.bf16.mxu0 %v1118
        %1484 = vmatmul.mubr.bf16.gmra.mrb[0].mxu0 %v840
        %v1485 = vpop.f32.mrb[0].mxu0
        %v1486 = vadd.f32 %v400, %v1485
        %v1487 = vpop.f32.mrb[0].mxu0
        %v1488 = vpop.f32.mrb[0].mxu0
        %v1489 = vadd.f32 %v400, %v1488
        %v1490 = vpop.f32.mrb[0].mxu0
        %1491 = vmatprep.mubr.bf16.mxu0 %v1121
        %1492 = vmatmul.mubr.bf16.gmra.mrb[0].mxu0 %v842
        %v1493 = vpop.f32.mrb[0].mxu0
        %v1494 = vadd.f32 %v400, %v1493
        %v1495 = vpop.f32.mrb[0].mxu0
        %v1496 = vpop.f32.mrb[0].mxu0
        %v1497 = vadd.f32 %v400, %v1496
        %v1498 = vpop.f32.mrb[0].mxu0
        %1499 = vmatprep.mubr.bf16.mxu0 %v1124
        %1500 = vmatmul.mubr.bf16.gmra.mrb[0].mxu0 %v844
        %v1501 = vpop.f32.mrb[0].mxu0
        %v1502 = vadd.f32 %v400, %v1501
        %v1503 = vpop.f32.mrb[0].mxu0
        %v1504 = vpop.f32.mrb[0].mxu0
        %v1505 = vadd.f32 %v400, %v1504
        %v1506 = vpop.f32.mrb[0].mxu0
        %1507 = vmatprep.mubr.bf16.mxu0 %v1127
        %1508 = vmatmul.mubr.bf16.gmra.mrb[0].mxu0 %v846
        %v1509 = vpop.f32.mrb[0].mxu0
        %v1510 = vadd.f32 %v400, %v1509
        %v1511 = vpop.f32.mrb[0].mxu0
        %v1512 = vpop.f32.mrb[0].mxu0
        %v1513 = vadd.f32 %v400, %v1512
        %v1514 = vpop.f32.mrb[0].mxu0
        %1515 = vmatprep.mubr.bf16.mxu0 %v1130
        %1516 = vmatmul.mubr.bf16.gmra.mrb[0].mxu0 %v848
        %v1517 = vpop.f32.mrb[0].mxu0
        %v1518 = vadd.f32 %v400, %v1517
        %v1519 = vpop.f32.mrb[0].mxu0
        %v1520 = vpop.f32.mrb[0].mxu0
        %v1521 = vadd.f32 %v400, %v1520
        %v1522 = vpop.f32.mrb[0].mxu0
        %1523 = vmatprep.mubr.bf16.mxu0 %v1133
        %1524 = vmatmul.mubr.bf16.gmra.mrb[0].mxu0 %v850
        %v1525 = vpop.f32.mrb[0].mxu0
        %v1526 = vadd.f32 %v400, %v1525
        %v1527 = vpop.f32.mrb[0].mxu0
        %v1528 = vpop.f32.mrb[0].mxu0
        %v1529 = vadd.f32 %v400, %v1528
        %v1530 = vpop.f32.mrb[0].mxu0
        %1531 = vmatprep.mubr.bf16.mxu0 %v1136
        %1532 = vmatmul.mubr.bf16.gmra.mrb[0].mxu0 %v852
        %v1533 = vpop.f32.mrb[0].mxu0
        %v1534 = vadd.f32 %v400, %v1533
        %v1535 = vpop.f32.mrb[0].mxu0
        %v1536 = vpop.f32.mrb[0].mxu0
        %v1537 = vadd.f32 %v400, %v1536
        %v1538 = vpop.f32.mrb[0].mxu0
        %1539 = vmatprep.mubr.bf16.mxu0 %v1139
        %1540 = vmatmul.mubr.bf16.gmra.mrb[0].mxu0 %v854
        %v1541 = vpop.f32.mrb[0].mxu0
        %v1542 = vadd.f32 %v400, %v1541
        %v1543 = vpop.f32.mrb[0].mxu0
        %v1544 = vpop.f32.mrb[0].mxu0
        %v1545 = vadd.f32 %v400, %v1544
        %v1546 = vpop.f32.mrb[0].mxu0
        %1547 = vmatprep.mubr.bf16.mxu0 %v1142
        %1548 = vmatmul.mubr.bf16.gmra.mrb[0].mxu0 %v856
        %v1549 = vpop.f32.mrb[0].mxu0
        %v1550 = vadd.f32 %v400, %v1549
        %v1551 = vpop.f32.mrb[0].mxu0
        %v1552 = vpop.f32.mrb[0].mxu0
        %v1553 = vadd.f32 %v400, %v1552
        %v1554 = vpop.f32.mrb[0].mxu0
        %1555 = vmatprep.mubr.bf16.mxu0 %v1145
        %1556 = vmatmul.mubr.bf16.gmra.mrb[0].mxu0 %v858
        %v1557 = vpop.f32.mrb[0].mxu0
        %v1558 = vadd.f32 %v400, %v1557
        %v1559 = vpop.f32.mrb[0].mxu0
        %v1560 = vpop.f32.mrb[0].mxu0
        %v1561 = vadd.f32 %v400, %v1560
        %v1562 = vpop.f32.mrb[0].mxu0
        %1563 = vmatprep.mubr.bf16.mxu0 %v1148
        %1564 = vmatmul.mubr.bf16.gmra.mrb[0].mxu0 %v860
        %v1565 = vpop.f32.mrb[0].mxu0
        %v1566 = vadd.f32 %v400, %v1565
        %v1567 = vpop.f32.mrb[0].mxu0
        %v1568 = vpop.f32.mrb[0].mxu0
        %v1569 = vadd.f32 %v400, %v1568
        %v1570 = vpop.f32.mrb[0].mxu0
        %1571 = vmatprep.mubr.bf16.mxu0 %v1151
        %1572 = vmatmul.mubr.bf16.gmra.mrb[0].mxu0 %v862
        %v1573 = vpop.f32.mrb[0].mxu0
        %v1574 = vadd.f32 %v400, %v1573
        %v1575 = vpop.f32.mrb[0].mxu0
        %v1576 = vpop.f32.mrb[0].mxu0
        %v1577 = vadd.f32 %v400, %v1576
        %v1578 = vpop.f32.mrb[0].mxu0
        %1579 = vmatprep.mubr.bf16.mxu0 %v1154
        %1580 = vmatmul.mubr.bf16.gmra.mrb[0].mxu0 %v864
        %v1581 = vpop.f32.mrb[0].mxu0
        %v1582 = vadd.f32 %v400, %v1581
        %v1583 = vpop.f32.mrb[0].mxu0
        %v1584 = vpop.f32.mrb[0].mxu0
        %v1585 = vadd.f32 %v400, %v1584
        %v1586 = vpop.f32.mrb[0].mxu0
        %1587 = vmatprep.mubr.bf16.mxu0 %v1157
        %1588 = vmatmul.mubr.bf16.gmra.mrb[0].mxu0 %v866
        %v1589 = vpop.f32.mrb[0].mxu0
        %v1590 = vadd.f32 %v400, %v1589
        %v1591 = vpop.f32.mrb[0].mxu0
        %v1592 = vpop.f32.mrb[0].mxu0
        %v1593 = vadd.f32 %v400, %v1592
        %v1594 = vpop.f32.mrb[0].mxu0
        %1595 = vmatprep.mubr.bf16.mxu0 %v1160
        %1596 = vmatmul.mubr.bf16.gmra.mrb[0].mxu0 %v868
        %v1597 = vpop.f32.mrb[0].mxu0
        %v1598 = vadd.f32 %v400, %v1597
        %v1599 = vpop.f32.mrb[0].mxu0
        %v1600 = vpop.f32.mrb[0].mxu0
        %v1601 = vadd.f32 %v400, %v1600
        %v1602 = vpop.f32.mrb[0].mxu0
        %1603 = vmatprep.mubr.bf16.mxu0 %v1163
        %1604 = vmatmul.mubr.bf16.gmra.mrb[0].mxu0 %v870
        %v1605 = vpop.f32.mrb[0].mxu0
        %v1606 = vadd.f32 %v400, %v1605
        %v1607 = vpop.f32.mrb[0].mxu0
        %v1608 = vpop.f32.mrb[0].mxu0
        %v1609 = vadd.f32 %v400, %v1608
        %v1610 = vpop.f32.mrb[0].mxu0
        %1611 = vmatprep.mubr.bf16.mxu0 %v1166
        %1612 = vmatmul.mubr.bf16.gmra.mrb[0].mxu0 %v872
        %v1613 = vpop.f32.mrb[0].mxu0
        %v1614 = vadd.f32 %v400, %v1613
        %v1615 = vpop.f32.mrb[0].mxu0
        %v1616 = vpop.f32.mrb[0].mxu0
        %v1617 = vadd.f32 %v400, %v1616
        %v1618 = vpop.f32.mrb[0].mxu0
        %1619 = vmatprep.mubr.bf16.mxu0 %v1169
        %1620 = vmatmul.mubr.bf16.gmra.mrb[0].mxu0 %v874
        %v1621 = vpop.f32.mrb[0].mxu0
        %v1622 = vadd.f32 %v400, %v1621
        %v1623 = vpop.f32.mrb[0].mxu0
        %v1624 = vpop.f32.mrb[0].mxu0
        %v1625 = vadd.f32 %v400, %v1624
        %v1626 = vpop.f32.mrb[0].mxu0
        %1627 = vmatprep.mubr.bf16.mxu0 %v1172
        %1628 = vmatmul.mubr.bf16.gmra.mrb[0].mxu0 %v876
        %v1629 = vpop.f32.mrb[0].mxu0
        %v1630 = vadd.f32 %v400, %v1629
        %v1631 = vpop.f32.mrb[0].mxu0
        %v1632 = vpop.f32.mrb[0].mxu0
        %v1633 = vadd.f32 %v400, %v1632
        %v1634 = vpop.f32.mrb[0].mxu0
        %1635 = vmatprep.mubr.bf16.mxu0 %v1175
        %1636 = vmatmul.mubr.bf16.gmra.mrb[0].mxu0 %v878
        %v1637 = vpop.f32.mrb[0].mxu0
        %v1638 = vadd.f32 %v400, %v1637
        %v1639 = vpop.f32.mrb[0].mxu0
        %v1640 = vpop.f32.mrb[0].mxu0
        %v1641 = vadd.f32 %v400, %v1640
        %v1642 = vpop.f32.mrb[0].mxu0
        %1643 = vmatprep.mubr.bf16.mxu0 %v1178
        %1644 = vmatmul.mubr.bf16.gmra.mrb[0].mxu0 %v880
        %v1645 = vpop.f32.mrb[0].mxu0
        %v1646 = vadd.f32 %v400, %v1645
        %v1647 = vpop.f32.mrb[0].mxu0
        %v1648 = vpop.f32.mrb[0].mxu0
        %v1649 = vadd.f32 %v400, %v1648
        %v1650 = vpop.f32.mrb[0].mxu0
        %1651 = vmatprep.mubr.bf16.mxu0 %v1181
        %1652 = vmatmul.mubr.bf16.gmra.mrb[0].mxu0 %v882
        %v1653 = vpop.f32.mrb[0].mxu0
        %v1654 = vadd.f32 %v400, %v1653
        %v1655 = vpop.f32.mrb[0].mxu0
        %v1656 = vpop.f32.mrb[0].mxu0
        %v1657 = vadd.f32 %v400, %v1656
        %v1658 = vpop.f32.mrb[0].mxu0
        %1659 = vmatprep.mubr.bf16.mxu0 %v1184
        %1660 = vmatmul.mubr.bf16.gmra.mrb[0].mxu0 %v884
        %v1661 = vpop.f32.mrb[0].mxu0
        %v1662 = vadd.f32 %v400, %v1661
        %v1663 = vpop.f32.mrb[0].mxu0
        %v1664 = vpop.f32.mrb[0].mxu0
        %v1665 = vadd.f32 %v400, %v1664
        %v1666 = vpop.f32.mrb[0].mxu0
        %1667 = vmatprep.mubr.bf16.mxu0 %v1187
        %1668 = vmatmul.mubr.bf16.gmra.mrb[0].mxu0 %v886
        %v1669 = vpop.f32.mrb[0].mxu0
        %v1670 = vadd.f32 %v400, %v1669
        %v1671 = vpop.f32.mrb[0].mxu0
        %v1672 = vpop.f32.mrb[0].mxu0
        %v1673 = vadd.f32 %v400, %v1672
        %v1674 = vpop.f32.mrb[0].mxu0
        %1675 = vmatprep.mubr.bf16.mxu0 %v1190
        %1676 = vmatmul.mubr.bf16.gmra.mrb[0].mxu0 %v888
        %v1677 = vpop.f32.mrb[0].mxu0
        %v1678 = vadd.f32 %v400, %v1677
        %v1679 = vpop.f32.mrb[0].mxu0
        %v1680 = vpop.f32.mrb[0].mxu0
        %v1681 = vadd.f32 %v400, %v1680
        %v1682 = vpop.f32.mrb[0].mxu0
        %1683 = vmatprep.mubr.bf16.mxu0 %v1193
        %1684 = vmatmul.mubr.bf16.gmra.mrb[0].mxu0 %v890
        %v1685 = vpop.f32.mrb[0].mxu0
        %v1686 = vadd.f32 %v400, %v1685
        %v1687 = vpop.f32.mrb[0].mxu0
        %v1688 = vpop.f32.mrb[0].mxu0
        %v1689 = vadd.f32 %v400, %v1688
        %v1690 = vpop.f32.mrb[0].mxu0
        %1691 = vmatprep.mubr.bf16.mxu0 %v1196
        %1692 = vmatmul.mubr.bf16.gmra.mrb[0].mxu0 %v892
        %v1693 = vpop.f32.mrb[0].mxu0
        %v1694 = vadd.f32 %v400, %v1693
        %v1695 = vpop.f32.mrb[0].mxu0
        %v1696 = vpop.f32.mrb[0].mxu0
        %v1697 = vadd.f32 %v400, %v1696
        %v1698 = vpop.f32.mrb[0].mxu0
        %1699 = vmatprep.mubr.bf16.mxu0 %v1199
        %1700 = vmatmul.mubr.bf16.gmra.mrb[0].mxu0 %v894
        %v1701 = vpop.f32.mrb[0].mxu0
        %v1702 = vadd.f32 %v400, %v1701
        %v1703 = vpop.f32.mrb[0].mxu0
        %v1704 = vpop.f32.mrb[0].mxu0
        %v1705 = vadd.f32 %v400, %v1704
        %v1706 = vpop.f32.mrb[0].mxu0
        %1707 = vmatprep.mubr.bf16.mxu0 %v1202
        %1708 = vmatmul.mubr.bf16.gmra.mrb[0].mxu0 %v896
        %v1709 = vpop.f32.mrb[0].mxu0
        %v1710 = vadd.f32 %v400, %v1709
        %v1711 = vpop.f32.mrb[0].mxu0
        %v1712 = vpop.f32.mrb[0].mxu0
        %v1713 = vadd.f32 %v400, %v1712
        %v1714 = vpop.f32.mrb[0].mxu0
        %1715 = vmatprep.mubr.bf16.mxu0 %v1205
        %1716 = vmatmul.mubr.bf16.gmra.mrb[0].mxu0 %v898
        %v1717 = vpop.f32.mrb[0].mxu0
        %v1718 = vadd.f32 %v400, %v1717
        %v1719 = vpop.f32.mrb[0].mxu0
        %v1720 = vpop.f32.mrb[0].mxu0
        %v1721 = vadd.f32 %v400, %v1720
        %v1722 = vpop.f32.mrb[0].mxu0
        %1723 = vmatprep.mubr.bf16.mxu0 %v1208
        %1724 = vmatmul.mubr.bf16.gmra.mrb[0].mxu0 %v900
        %v1725 = vpop.f32.mrb[0].mxu0
        %v1726 = vadd.f32 %v400, %v1725
        %v1727 = vpop.f32.mrb[0].mxu0
        %v1728 = vpop.f32.mrb[0].mxu0
        %v1729 = vadd.f32 %v400, %v1728
        %v1730 = vpop.f32.mrb[0].mxu0
        %1731 = vmatprep.mubr.bf16.mxu0 %v1211
        %1732 = vmatmul.mubr.bf16.gmra.mrb[0].mxu0 %v902
        %v1733 = vpop.f32.mrb[0].mxu0
        %v1734 = vadd.f32 %v400, %v1733
        %v1735 = vpop.f32.mrb[0].mxu0
        %v1736 = vpop.f32.mrb[0].mxu0
        %v1737 = vadd.f32 %v400, %v1736
        %v1738 = vpop.f32.mrb[0].mxu0
        %1739 = vmatprep.mubr.bf16.mxu0 %v1214
        %1740 = vmatmul.mubr.bf16.gmra.mrb[0].mxu0 %v904
        %v1741 = vpop.f32.mrb[0].mxu0
        %v1742 = vadd.f32 %v400, %v1741
        %v1743 = vpop.f32.mrb[0].mxu0
        %v1744 = vpop.f32.mrb[0].mxu0
        %v1745 = vadd.f32 %v400, %v1744
        %v1746 = vpop.f32.mrb[0].mxu0
        %1747 = vmatprep.mubr.bf16.mxu0 %v1217
        %1748 = vmatmul.mubr.bf16.gmra.mrb[0].mxu0 %v906
        %v1749 = vpop.f32.mrb[0].mxu0
        %v1750 = vadd.f32 %v400, %v1749
        %v1751 = vpop.f32.mrb[0].mxu0
        %v1752 = vpop.f32.mrb[0].mxu0
        %v1753 = vadd.f32 %v400, %v1752
        %v1754 = vpop.f32.mrb[0].mxu0
        %1755 = vmatprep.mubr.bf16.mxu0 %v1220
        %1756 = vmatmul.mubr.bf16.gmra.mrb[0].mxu0 %v908
        %v1757 = vpop.f32.mrb[0].mxu0
        %v1758 = vadd.f32 %v400, %v1757
        %v1759 = vpop.f32.mrb[0].mxu0
        %v1760 = vpop.f32.mrb[0].mxu0
        %v1761 = vadd.f32 %v400, %v1760
        %v1762 = vpop.f32.mrb[0].mxu0
        %1763 = vmatprep.mubr.bf16.mxu0 %v1223
        %1764 = vmatmul.mubr.bf16.gmra.mrb[0].mxu0 %v910
        %v1765 = vpop.f32.mrb[0].mxu0
        %v1766 = vadd.f32 %v400, %v1765
        %v1767 = vpop.f32.mrb[0].mxu0
        %v1768 = vpop.f32.mrb[0].mxu0
        %v1769 = vadd.f32 %v400, %v1768
        %v1770 = vpop.f32.mrb[0].mxu0
        %1771 = vmatprep.mubr.bf16.mxu0 %v1226
        %1772 = vmatmul.mubr.bf16.gmra.mrb[0].mxu0 %v912
        %v1773 = vpop.f32.mrb[0].mxu0
        %v1774 = vadd.f32 %v400, %v1773
        %v1775 = vpop.f32.mrb[0].mxu0
        %v1776 = vpop.f32.mrb[0].mxu0
        %v1777 = vadd.f32 %v400, %v1776
        %v1778 = vpop.f32.mrb[0].mxu0
        %1779 = vdwg.mxu0
        %v1780 = vmax.f32 %v1270, 0.0
        %v1781 = vmax.f32 %v1273, 0.0
        %v1782 = vmax.f32 %v1278, 0.0
        %v1783 = vmax.f32 %v1281, 0.0
        %v1784 = vmax.f32 %v1286, 0.0
        %v1785 = vmax.f32 %v1289, 0.0
        %v1786 = vmax.f32 %v1294, 0.0
        %v1787 = vmax.f32 %v1297, 0.0
        %v1788 = vmax.f32 %v1302, 0.0
        %v1789 = vmax.f32 %v1305, 0.0
        %v1790 = vmax.f32 %v1310, 0.0
        %v1791 = vmax.f32 %v1313, 0.0
        %v1792 = vmax.f32 %v1318, 0.0
        %v1793 = vmax.f32 %v1321, 0.0
        %v1794 = vmax.f32 %v1326, 0.0
        %v1795 = vmax.f32 %v1329, 0.0
        %v1796 = vmax.f32 %v1334, 0.0
        %v1797 = vmax.f32 %v1337, 0.0
        %v1798 = vmax.f32 %v1342, 0.0
        %v1799 = vmax.f32 %v1345, 0.0
        %v1800 = vmax.f32 %v1350, 0.0
        %v1801 = vmax.f32 %v1353, 0.0
        %v1802 = vmax.f32 %v1358, 0.0
        %v1803 = vmax.f32 %v1361, 0.0
        %v1804 = vmax.f32 %v1366, 0.0
        %v1805 = vmax.f32 %v1369, 0.0
        %v1806 = vmax.f32 %v1374, 0.0
        %v1807 = vmax.f32 %v1377, 0.0
        %v1808 = vmax.f32 %v1382, 0.0
        %v1809 = vmax.f32 %v1385, 0.0
        %v1810 = vmax.f32 %v1390, 0.0
        %v1811 = vmax.f32 %v1393, 0.0
        %v1812 = vmax.f32 %v1398, 0.0
        %v1813 = vmax.f32 %v1401, 0.0
        %v1814 = vmax.f32 %v1406, 0.0
        %v1815 = vmax.f32 %v1409, 0.0
        %v1816 = vmax.f32 %v1414, 0.0
        %v1817 = vmax.f32 %v1417, 0.0
        %v1818 = vmax.f32 %v1422, 0.0
        %v1819 = vmax.f32 %v1425, 0.0
        %v1820 = vmax.f32 %v1430, 0.0
        %v1821 = vmax.f32 %v1433, 0.0
        %v1822 = vmax.f32 %v1438, 0.0
        %v1823 = vmax.f32 %v1441, 0.0
        %v1824 = vmax.f32 %v1446, 0.0
        %v1825 = vmax.f32 %v1449, 0.0
        %v1826 = vmax.f32 %v1454, 0.0
        %v1827 = vmax.f32 %v1457, 0.0
        %v1828 = vmax.f32 %v1462, 0.0
        %v1829 = vmax.f32 %v1465, 0.0
        %v1830 = vmax.f32 %v1470, 0.0
        %v1831 = vmax.f32 %v1473, 0.0
        %v1832 = vmax.f32 %v1478, 0.0
        %v1833 = vmax.f32 %v1481, 0.0
        %v1834 = vmax.f32 %v1486, 0.0
        %v1835 = vmax.f32 %v1489, 0.0
        %v1836 = vmax.f32 %v1494, 0.0
        %v1837 = vmax.f32 %v1497, 0.0
        %v1838 = vmax.f32 %v1502, 0.0
        %v1839 = vmax.f32 %v1505, 0.0
        %v1840 = vmax.f32 %v1510, 0.0
        %v1841 = vmax.f32 %v1513, 0.0
        %v1842 = vmax.f32 %v1518, 0.0
        %v1843 = vmax.f32 %v1521, 0.0
        %v1844 = vmax.f32 %v1526, 0.0
        %v1845 = vmax.f32 %v1529, 0.0
        %v1846 = vmax.f32 %v1534, 0.0
        %v1847 = vmax.f32 %v1537, 0.0
        %v1848 = vmax.f32 %v1542, 0.0
        %v1849 = vmax.f32 %v1545, 0.0
        %v1850 = vmax.f32 %v1550, 0.0
        %v1851 = vmax.f32 %v1553, 0.0
        %v1852 = vmax.f32 %v1558, 0.0
        %v1853 = vmax.f32 %v1561, 0.0
        %v1854 = vmax.f32 %v1566, 0.0
        %v1855 = vmax.f32 %v1569, 0.0
        %v1856 = vmax.f32 %v1574, 0.0
        %v1857 = vmax.f32 %v1577, 0.0
        %v1858 = vmax.f32 %v1582, 0.0
        %v1859 = vmax.f32 %v1585, 0.0
        %v1860 = vmax.f32 %v1590, 0.0
        %v1861 = vmax.f32 %v1593, 0.0
        %v1862 = vmax.f32 %v1598, 0.0
        %v1863 = vmax.f32 %v1601, 0.0
        %v1864 = vmax.f32 %v1606, 0.0
        %v1865 = vmax.f32 %v1609, 0.0
        %v1866 = vmax.f32 %v1614, 0.0
        %v1867 = vmax.f32 %v1617, 0.0
        %v1868 = vmax.f32 %v1622, 0.0
        %v1869 = vmax.f32 %v1625, 0.0
        %v1870 = vmax.f32 %v1630, 0.0
        %v1871 = vmax.f32 %v1633, 0.0
        %v1872 = vmax.f32 %v1638, 0.0
        %v1873 = vmax.f32 %v1641, 0.0
        %v1874 = vmax.f32 %v1646, 0.0
        %v1875 = vmax.f32 %v1649, 0.0
        %v1876 = vmax.f32 %v1654, 0.0
        %v1877 = vmax.f32 %v1657, 0.0
        %v1878 = vmax.f32 %v1662, 0.0
        %v1879 = vmax.f32 %v1665, 0.0
        %v1880 = vmax.f32 %v1670, 0.0
        %v1881 = vmax.f32 %v1673, 0.0
        %v1882 = vmax.f32 %v1678, 0.0
        %v1883 = vmax.f32 %v1681, 0.0
        %v1884 = vmax.f32 %v1686, 0.0
        %v1885 = vmax.f32 %v1689, 0.0
        %v1886 = vmax.f32 %v1694, 0.0
        %v1887 = vmax.f32 %v1697, 0.0
        %v1888 = vmax.f32 %v1702, 0.0
        %v1889 = vmax.f32 %v1705, 0.0
        %v1890 = vmax.f32 %v1710, 0.0
        %v1891 = vmax.f32 %v1713, 0.0
        %v1892 = vmax.f32 %v1718, 0.0
        %v1893 = vmax.f32 %v1721, 0.0
        %v1894 = vmax.f32 %v1726, 0.0
        %v1895 = vmax.f32 %v1729, 0.0
        %v1896 = vmax.f32 %v1734, 0.0
        %v1897 = vmax.f32 %v1737, 0.0
        %v1898 = vmax.f32 %v1742, 0.0
        %v1899 = vmax.f32 %v1745, 0.0
        %v1900 = vmax.f32 %v1750, 0.0
        %v1901 = vmax.f32 %v1753, 0.0
        %v1902 = vmax.f32 %v1758, 0.0
        %v1903 = vmax.f32 %v1761, 0.0
        %v1904 = vmax.f32 %v1766, 0.0
        %v1905 = vmax.f32 %v1769, 0.0
        %v1906 = vmax.f32 %v1774, 0.0
        %v1907 = vmax.f32 %v1777, 0.0
        %v1908 = vpack.c.bf16 %v1781, %v1780
        %v1909 = vpack.c.bf16 %v1783, %v1782
        %v1910 = vpack.c.bf16 %v1785, %v1784
        %v1911 = vpack.c.bf16 %v1787, %v1786
        %v1912 = vpack.c.bf16 %v1789, %v1788
        %v1913 = vpack.c.bf16 %v1791, %v1790
        %v1914 = vpack.c.bf16 %v1793, %v1792
        %v1915 = vpack.c.bf16 %v1795, %v1794
        %v1916 = vpack.c.bf16 %v1797, %v1796
        %v1917 = vpack.c.bf16 %v1799, %v1798
        %v1918 = vpack.c.bf16 %v1801, %v1800
        %v1919 = vpack.c.bf16 %v1803, %v1802
        %v1920 = vpack.c.bf16 %v1805, %v1804
        %v1921 = vpack.c.bf16 %v1807, %v1806
        %v1922 = vpack.c.bf16 %v1809, %v1808
        %v1923 = vpack.c.bf16 %v1811, %v1810
        %v1924 = vpack.c.bf16 %v1813, %v1812
        %v1925 = vpack.c.bf16 %v1815, %v1814
        %v1926 = vpack.c.bf16 %v1817, %v1816
        %v1927 = vpack.c.bf16 %v1819, %v1818
        %v1928 = vpack.c.bf16 %v1821, %v1820
        %v1929 = vpack.c.bf16 %v1823, %v1822
        %v1930 = vpack.c.bf16 %v1825, %v1824
        %v1931 = vpack.c.bf16 %v1827, %v1826
        %v1932 = vpack.c.bf16 %v1829, %v1828
        %v1933 = vpack.c.bf16 %v1831, %v1830
        %v1934 = vpack.c.bf16 %v1833, %v1832
        %v1935 = vpack.c.bf16 %v1835, %v1834
        %v1936 = vpack.c.bf16 %v1837, %v1836
        %v1937 = vpack.c.bf16 %v1839, %v1838
        %v1938 = vpack.c.bf16 %v1841, %v1840
        %v1939 = vpack.c.bf16 %v1843, %v1842
        %v1940 = vpack.c.bf16 %v1845, %v1844
        %v1941 = vpack.c.bf16 %v1847, %v1846
        %v1942 = vpack.c.bf16 %v1849, %v1848
        %v1943 = vpack.c.bf16 %v1851, %v1850
        %v1944 = vpack.c.bf16 %v1853, %v1852
        %v1945 = vpack.c.bf16 %v1855, %v1854
        %v1946 = vpack.c.bf16 %v1857, %v1856
        %v1947 = vpack.c.bf16 %v1859, %v1858
        %v1948 = vpack.c.bf16 %v1861, %v1860
        %v1949 = vpack.c.bf16 %v1863, %v1862
        %v1950 = vpack.c.bf16 %v1865, %v1864
        %v1951 = vpack.c.bf16 %v1867, %v1866
        %v1952 = vpack.c.bf16 %v1869, %v1868
        %v1953 = vpack.c.bf16 %v1871, %v1870
        %v1954 = vpack.c.bf16 %v1873, %v1872
        %v1955 = vpack.c.bf16 %v1875, %v1874
        %v1956 = vpack.c.bf16 %v1877, %v1876
        %v1957 = vpack.c.bf16 %v1879, %v1878
        %v1958 = vpack.c.bf16 %v1881, %v1880
        %v1959 = vpack.c.bf16 %v1883, %v1882
        %v1960 = vpack.c.bf16 %v1885, %v1884
        %v1961 = vpack.c.bf16 %v1887, %v1886
        %v1962 = vpack.c.bf16 %v1889, %v1888
        %v1963 = vpack.c.bf16 %v1891, %v1890
        %v1964 = vpack.c.bf16 %v1893, %v1892
        %v1965 = vpack.c.bf16 %v1895, %v1894
        %v1966 = vpack.c.bf16 %v1897, %v1896
        %v1967 = vpack.c.bf16 %v1899, %v1898
        %v1968 = vpack.c.bf16 %v1901, %v1900
        %v1969 = vpack.c.bf16 %v1903, %v1902
        %v1970 = vpack.c.bf16 %v1905, %v1904
        %v1971 = vpack.c.bf16 %v1907, %v1906
        %v2036 = vunpack.c.l.b16 %v1908
        %v2037 = vunpack.c.h.b16 %v1908
        %v2038 = vunpack.c.l.b16 %v1909
        %v2039 = vunpack.c.h.b16 %v1909
        %v2040 = vunpack.c.l.b16 %v1910
        %v2041 = vunpack.c.h.b16 %v1910
        %v2042 = vunpack.c.l.b16 %v1911
        %v2043 = vunpack.c.h.b16 %v1911
        %v2044 = vunpack.c.l.b16 %v1912
        %v2045 = vunpack.c.h.b16 %v1912
        %v2046 = vunpack.c.l.b16 %v1913
        %v2047 = vunpack.c.h.b16 %v1913
        %v2048 = vunpack.c.l.b16 %v1914
        %v2049 = vunpack.c.h.b16 %v1914
        %v2050 = vunpack.c.l.b16 %v1915
        %v2051 = vunpack.c.h.b16 %v1915
        %v2052 = vunpack.c.l.b16 %v1916
        %v2053 = vunpack.c.h.b16 %v1916
        %v2054 = vunpack.c.l.b16 %v1917
        %v2055 = vunpack.c.h.b16 %v1917
        %v2056 = vunpack.c.l.b16 %v1918
        %v2057 = vunpack.c.h.b16 %v1918
        %v2058 = vunpack.c.l.b16 %v1919
        %v2059 = vunpack.c.h.b16 %v1919
        %v2060 = vunpack.c.l.b16 %v1920
        %v2061 = vunpack.c.h.b16 %v1920
        %v2062 = vunpack.c.l.b16 %v1921
        %v2063 = vunpack.c.h.b16 %v1921
        %v2064 = vunpack.c.l.b16 %v1922
        %v2065 = vunpack.c.h.b16 %v1922
        %v2066 = vunpack.c.l.b16 %v1923
        %v2067 = vunpack.c.h.b16 %v1923
        %v2068 = vunpack.c.l.b16 %v1924
        %v2069 = vunpack.c.h.b16 %v1924
        %v2070 = vunpack.c.l.b16 %v1925
        %v2071 = vunpack.c.h.b16 %v1925
        %v2072 = vunpack.c.l.b16 %v1926
        %v2073 = vunpack.c.h.b16 %v1926
        %v2074 = vunpack.c.l.b16 %v1927
        %v2075 = vunpack.c.h.b16 %v1927
        %v2076 = vunpack.c.l.b16 %v1928
        %v2077 = vunpack.c.h.b16 %v1928
        %v2078 = vunpack.c.l.b16 %v1929
        %v2079 = vunpack.c.h.b16 %v1929
        %v2080 = vunpack.c.l.b16 %v1930
        %v2081 = vunpack.c.h.b16 %v1930
        %v2082 = vunpack.c.l.b16 %v1931
        %v2083 = vunpack.c.h.b16 %v1931
        %v2084 = vunpack.c.l.b16 %v1932
        %v2085 = vunpack.c.h.b16 %v1932
        %v2086 = vunpack.c.l.b16 %v1933
        %v2087 = vunpack.c.h.b16 %v1933
        %v2088 = vunpack.c.l.b16 %v1934
        %v2089 = vunpack.c.h.b16 %v1934
        %v2090 = vunpack.c.l.b16 %v1935
        %v2091 = vunpack.c.h.b16 %v1935
        %v2092 = vunpack.c.l.b16 %v1936
        %v2093 = vunpack.c.h.b16 %v1936
        %v2094 = vunpack.c.l.b16 %v1937
        %v2095 = vunpack.c.h.b16 %v1937
        %v2096 = vunpack.c.l.b16 %v1938
        %v2097 = vunpack.c.h.b16 %v1938
        %v2098 = vunpack.c.l.b16 %v1939
        %v2099 = vunpack.c.h.b16 %v1939
        %v2100 = vunpack.c.l.b16 %v1940
        %v2101 = vunpack.c.h.b16 %v1940
        %v2102 = vunpack.c.l.b16 %v1941
        %v2103 = vunpack.c.h.b16 %v1941
        %v2104 = vunpack.c.l.b16 %v1942
        %v2105 = vunpack.c.h.b16 %v1942
        %v2106 = vunpack.c.l.b16 %v1943
        %v2107 = vunpack.c.h.b16 %v1943
        %v2108 = vunpack.c.l.b16 %v1944
        %v2109 = vunpack.c.h.b16 %v1944
        %v2110 = vunpack.c.l.b16 %v1945
        %v2111 = vunpack.c.h.b16 %v1945
        %v2112 = vunpack.c.l.b16 %v1946
        %v2113 = vunpack.c.h.b16 %v1946
        %v2114 = vunpack.c.l.b16 %v1947
        %v2115 = vunpack.c.h.b16 %v1947
        %v2116 = vunpack.c.l.b16 %v1948
        %v2117 = vunpack.c.h.b16 %v1948
        %v2118 = vunpack.c.l.b16 %v1949
        %v2119 = vunpack.c.h.b16 %v1949
        %v2120 = vunpack.c.l.b16 %v1950
        %v2121 = vunpack.c.h.b16 %v1950
        %v2122 = vunpack.c.l.b16 %v1951
        %v2123 = vunpack.c.h.b16 %v1951
        %v2124 = vunpack.c.l.b16 %v1952
        %v2125 = vunpack.c.h.b16 %v1952
        %v2126 = vunpack.c.l.b16 %v1953
        %v2127 = vunpack.c.h.b16 %v1953
        %v2128 = vunpack.c.l.b16 %v1954
        %v2129 = vunpack.c.h.b16 %v1954
        %v2130 = vunpack.c.l.b16 %v1955
        %v2131 = vunpack.c.h.b16 %v1955
        %v2132 = vunpack.c.l.b16 %v1956
        %v2133 = vunpack.c.h.b16 %v1956
        %v2134 = vunpack.c.l.b16 %v1957
        %v2135 = vunpack.c.h.b16 %v1957
        %v2136 = vunpack.c.l.b16 %v1958
        %v2137 = vunpack.c.h.b16 %v1958
        %v2138 = vunpack.c.l.b16 %v1959
        %v2139 = vunpack.c.h.b16 %v1959
        %v2140 = vunpack.c.l.b16 %v1960
        %v2141 = vunpack.c.h.b16 %v1960
        %v2142 = vunpack.c.l.b16 %v1961
        %v2143 = vunpack.c.h.b16 %v1961
        %v2144 = vunpack.c.l.b16 %v1962
        %v2145 = vunpack.c.h.b16 %v1962
        %v2146 = vunpack.c.l.b16 %v1963
        %v2147 = vunpack.c.h.b16 %v1963
        %v2148 = vunpack.c.l.b16 %v1964
        %v2149 = vunpack.c.h.b16 %v1964
        %v2150 = vunpack.c.l.b16 %v1965
        %v2151 = vunpack.c.h.b16 %v1965
        %v2152 = vunpack.c.l.b16 %v1966
        %v2153 = vunpack.c.h.b16 %v1966
        %v2154 = vunpack.c.l.b16 %v1967
        %v2155 = vunpack.c.h.b16 %v1967
        %v2156 = vunpack.c.l.b16 %v1968
        %v2157 = vunpack.c.h.b16 %v1968
        %v2158 = vunpack.c.l.b16 %v1969
        %v2159 = vunpack.c.h.b16 %v1969
        %v2160 = vunpack.c.l.b16 %v1970
        %v2161 = vunpack.c.h.b16 %v1970
        %v2162 = vunpack.c.l.b16 %v1971
        %v2163 = vunpack.c.h.b16 %v1971
        %v2164 = vpack.c.b16 %v2036, %v2036
        %v2165 = vpack.c.b16 %v2037, %v2037
        %v2166 = vpack.c.b16 %v2038, %v2038
        %v2167 = vpack.c.b16 %v2039, %v2039
        %v2168 = vpack.c.b16 %v2040, %v2040
        %v2169 = vpack.c.b16 %v2041, %v2041
        %v2170 = vpack.c.b16 %v2042, %v2042
        %v2171 = vpack.c.b16 %v2043, %v2043
        %v2172 = vpack.c.b16 %v2044, %v2044
        %v2173 = vpack.c.b16 %v2045, %v2045
        %v2174 = vpack.c.b16 %v2046, %v2046
        %v2175 = vpack.c.b16 %v2047, %v2047
        %v2176 = vpack.c.b16 %v2048, %v2048
        %v2177 = vpack.c.b16 %v2049, %v2049
        %v2178 = vpack.c.b16 %v2050, %v2050
        %v2179 = vpack.c.b16 %v2051, %v2051
        %v2180 = vpack.c.b16 %v2052, %v2052
        %v2181 = vpack.c.b16 %v2053, %v2053
        %v2182 = vpack.c.b16 %v2054, %v2054
        %v2183 = vpack.c.b16 %v2055, %v2055
        %v2184 = vpack.c.b16 %v2056, %v2056
        %v2185 = vpack.c.b16 %v2057, %v2057
        %v2186 = vpack.c.b16 %v2058, %v2058
        %v2187 = vpack.c.b16 %v2059, %v2059
        %v2188 = vpack.c.b16 %v2060, %v2060
        %v2189 = vpack.c.b16 %v2061, %v2061
        %v2190 = vpack.c.b16 %v2062, %v2062
        %v2191 = vpack.c.b16 %v2063, %v2063
        %v2192 = vpack.c.b16 %v2064, %v2064
        %v2193 = vpack.c.b16 %v2065, %v2065
        %v2194 = vpack.c.b16 %v2066, %v2066
        %v2195 = vpack.c.b16 %v2067, %v2067
        %v2196 = vpack.c.b16 %v2068, %v2068
        %v2197 = vpack.c.b16 %v2069, %v2069
        %v2198 = vpack.c.b16 %v2070, %v2070
        %v2199 = vpack.c.b16 %v2071, %v2071
        %v2200 = vpack.c.b16 %v2072, %v2072
        %v2201 = vpack.c.b16 %v2073, %v2073
        %v2202 = vpack.c.b16 %v2074, %v2074
        %v2203 = vpack.c.b16 %v2075, %v2075
        %v2204 = vpack.c.b16 %v2076, %v2076
        %v2205 = vpack.c.b16 %v2077, %v2077
        %v2206 = vpack.c.b16 %v2078, %v2078
        %v2207 = vpack.c.b16 %v2079, %v2079
        %v2208 = vpack.c.b16 %v2080, %v2080
        %v2209 = vpack.c.b16 %v2081, %v2081
        %v2210 = vpack.c.b16 %v2082, %v2082
        %v2211 = vpack.c.b16 %v2083, %v2083
        %v2212 = vpack.c.b16 %v2084, %v2084
        %v2213 = vpack.c.b16 %v2085, %v2085
        %v2214 = vpack.c.b16 %v2086, %v2086
        %v2215 = vpack.c.b16 %v2087, %v2087
        %v2216 = vpack.c.b16 %v2088, %v2088
        %v2217 = vpack.c.b16 %v2089, %v2089
        %v2218 = vpack.c.b16 %v2090, %v2090
        %v2219 = vpack.c.b16 %v2091, %v2091
        %v2220 = vpack.c.b16 %v2092, %v2092
        %v2221 = vpack.c.b16 %v2093, %v2093
        %v2222 = vpack.c.b16 %v2094, %v2094
        %v2223 = vpack.c.b16 %v2095, %v2095
        %v2224 = vpack.c.b16 %v2096, %v2096
        %v2225 = vpack.c.b16 %v2097, %v2097
        %v2226 = vpack.c.b16 %v2098, %v2098
        %v2227 = vpack.c.b16 %v2099, %v2099
        %v2228 = vpack.c.b16 %v2100, %v2100
        %v2229 = vpack.c.b16 %v2101, %v2101
        %v2230 = vpack.c.b16 %v2102, %v2102
        %v2231 = vpack.c.b16 %v2103, %v2103
        %v2232 = vpack.c.b16 %v2104, %v2104
        %v2233 = vpack.c.b16 %v2105, %v2105
        %v2234 = vpack.c.b16 %v2106, %v2106
        %v2235 = vpack.c.b16 %v2107, %v2107
        %v2236 = vpack.c.b16 %v2108, %v2108
        %v2237 = vpack.c.b16 %v2109, %v2109
        %v2238 = vpack.c.b16 %v2110, %v2110
        %v2239 = vpack.c.b16 %v2111, %v2111
        %v2240 = vpack.c.b16 %v2112, %v2112
        %v2241 = vpack.c.b16 %v2113, %v2113
        %v2242 = vpack.c.b16 %v2114, %v2114
        %v2243 = vpack.c.b16 %v2115, %v2115
        %v2244 = vpack.c.b16 %v2116, %v2116
        %v2245 = vpack.c.b16 %v2117, %v2117
        %v2246 = vpack.c.b16 %v2118, %v2118
        %v2247 = vpack.c.b16 %v2119, %v2119
        %v2248 = vpack.c.b16 %v2120, %v2120
        %v2249 = vpack.c.b16 %v2121, %v2121
        %v2250 = vpack.c.b16 %v2122, %v2122
        %v2251 = vpack.c.b16 %v2123, %v2123
        %v2252 = vpack.c.b16 %v2124, %v2124
        %v2253 = vpack.c.b16 %v2125, %v2125
        %v2254 = vpack.c.b16 %v2126, %v2126
        %v2255 = vpack.c.b16 %v2127, %v2127
        %v2256 = vpack.c.b16 %v2128, %v2128
        %v2257 = vpack.c.b16 %v2129, %v2129
        %v2258 = vpack.c.b16 %v2130, %v2130
        %v2259 = vpack.c.b16 %v2131, %v2131
        %v2260 = vpack.c.b16 %v2132, %v2132
        %v2261 = vpack.c.b16 %v2133, %v2133
        %v2262 = vpack.c.b16 %v2134, %v2134
        %v2263 = vpack.c.b16 %v2135, %v2135
        %v2264 = vpack.c.b16 %v2136, %v2136
        %v2265 = vpack.c.b16 %v2137, %v2137
        %v2266 = vpack.c.b16 %v2138, %v2138
        %v2267 = vpack.c.b16 %v2139, %v2139
        %v2268 = vpack.c.b16 %v2140, %v2140
        %v2269 = vpack.c.b16 %v2141, %v2141
        %v2270 = vpack.c.b16 %v2142, %v2142
        %v2271 = vpack.c.b16 %v2143, %v2143
        %v2272 = vpack.c.b16 %v2144, %v2144
        %v2273 = vpack.c.b16 %v2145, %v2145
        %v2274 = vpack.c.b16 %v2146, %v2146
        %v2275 = vpack.c.b16 %v2147, %v2147
        %v2276 = vpack.c.b16 %v2148, %v2148
        %v2277 = vpack.c.b16 %v2149, %v2149
        %v2278 = vpack.c.b16 %v2150, %v2150
        %v2279 = vpack.c.b16 %v2151, %v2151
        %v2280 = vpack.c.b16 %v2152, %v2152
        %v2281 = vpack.c.b16 %v2153, %v2153
        %v2282 = vpack.c.b16 %v2154, %v2154
        %v2283 = vpack.c.b16 %v2155, %v2155
        %v2284 = vpack.c.b16 %v2156, %v2156
        %v2285 = vpack.c.b16 %v2157, %v2157
        %v2286 = vpack.c.b16 %v2158, %v2158
        %v2287 = vpack.c.b16 %v2159, %v2159
        %v2288 = vpack.c.b16 %v2160, %v2160
        %v2289 = vpack.c.b16 %v2161, %v2161
        %v2290 = vpack.c.b16 %v2162, %v2162
        %v2291 = vpack.c.b16 %v2163, %v2163
        %2420 = vst [vmem:[%s244] sm:$0xf] %v2164
        %2421 = vst [vmem:[%s244 + $0x4] sm:$0xf] %v2165
        %2422 = vst [vmem:[%s244 + $0x8] sm:$0xf] %v2166
        %2423 = vst [vmem:[%s244 + $0xc] sm:$0xf] %v2167
        %2424 = vst [vmem:[%s244 + $0x10] sm:$0xf] %v2168
        %2425 = vst [vmem:[%s244 + $0x14] sm:$0xf] %v2169
        %2426 = vst [vmem:[%s244 + $0x18] sm:$0xf] %v2170
        %2427 = vst [vmem:[%s244 + $0x1c] sm:$0xf] %v2171
        %2428 = vst [vmem:[%s244 + $0x20] sm:$0xf] %v2172
        %2429 = vst [vmem:[%s244 + $0x24] sm:$0xf] %v2173
        %2430 = vst [vmem:[%s244 + $0x28] sm:$0xf] %v2174
        %2431 = vst [vmem:[%s244 + $0x2c] sm:$0xf] %v2175
        %2432 = vst [vmem:[%s244 + $0x30] sm:$0xf] %v2176
        %2433 = vst [vmem:[%s244 + $0x34] sm:$0xf] %v2177
        %2434 = vst [vmem:[%s244 + $0x38] sm:$0xf] %v2178
        %2435 = vst [vmem:[%s244 + $0x3c] sm:$0xf] %v2179
        %2436 = vst [vmem:[%s244 + $0x40] sm:$0xf] %v2180
        %2437 = vst [vmem:[%s244 + $0x44] sm:$0xf] %v2181
        %2438 = vst [vmem:[%s244 + $0x48] sm:$0xf] %v2182
        %2439 = vst [vmem:[%s244 + $0x4c] sm:$0xf] %v2183
        %2440 = vst [vmem:[%s244 + $0x50] sm:$0xf] %v2184
        %2441 = vst [vmem:[%s244 + $0x54] sm:$0xf] %v2185
        %2442 = vst [vmem:[%s244 + $0x58] sm:$0xf] %v2186
        %2443 = vst [vmem:[%s244 + $0x5c] sm:$0xf] %v2187
        %2444 = vst [vmem:[%s244 + $0x60] sm:$0xf] %v2188
        %2445 = vst [vmem:[%s244 + $0x64] sm:$0xf] %v2189
        %2446 = vst [vmem:[%s244 + $0x68] sm:$0xf] %v2190
        %2447 = vst [vmem:[%s244 + $0x6c] sm:$0xf] %v2191
        %2448 = vst [vmem:[%s244 + $0x70] sm:$0xf] %v2192
        %2449 = vst [vmem:[%s244 + $0x74] sm:$0xf] %v2193
        %2450 = vst [vmem:[%s244 + $0x78] sm:$0xf] %v2194
        %2451 = vst [vmem:[%s244 + $0x7c] sm:$0xf] %v2195
        %2452 = vst [vmem:[%s244 + $0x80] sm:$0xf] %v2196
        %2453 = vst [vmem:[%s244 + $0x84] sm:$0xf] %v2197
        %2454 = vst [vmem:[%s244 + $0x88] sm:$0xf] %v2198
        %2455 = vst [vmem:[%s244 + $0x8c] sm:$0xf] %v2199
        %2456 = vst [vmem:[%s244 + $0x90] sm:$0xf] %v2200
        %2457 = vst [vmem:[%s244 + $0x94] sm:$0xf] %v2201
        %2458 = vst [vmem:[%s244 + $0x98] sm:$0xf] %v2202
        %2459 = vst [vmem:[%s244 + $0x9c] sm:$0xf] %v2203
        %2460 = vst [vmem:[%s244 + $0xa0] sm:$0xf] %v2204
        %2461 = vst [vmem:[%s244 + $0xa4] sm:$0xf] %v2205
        %2462 = vst [vmem:[%s244 + $0xa8] sm:$0xf] %v2206
        %2463 = vst [vmem:[%s244 + $0xac] sm:$0xf] %v2207
        %2464 = vst [vmem:[%s244 + $0xb0] sm:$0xf] %v2208
        %2465 = vst [vmem:[%s244 + $0xb4] sm:$0xf] %v2209
        %2466 = vst [vmem:[%s244 + $0xb8] sm:$0xf] %v2210
        %2467 = vst [vmem:[%s244 + $0xbc] sm:$0xf] %v2211
        %2468 = vst [vmem:[%s244 + $0xc0] sm:$0xf] %v2212
        %2469 = vst [vmem:[%s244 + $0xc4] sm:$0xf] %v2213
        %2470 = vst [vmem:[%s244 + $0xc8] sm:$0xf] %v2214
        %2471 = vst [vmem:[%s244 + $0xcc] sm:$0xf] %v2215
        %2472 = vst [vmem:[%s244 + $0xd0] sm:$0xf] %v2216
        %2473 = vst [vmem:[%s244 + $0xd4] sm:$0xf] %v2217
        %2474 = vst [vmem:[%s244 + $0xd8] sm:$0xf] %v2218
        %2475 = vst [vmem:[%s244 + $0xdc] sm:$0xf] %v2219
        %2476 = vst [vmem:[%s244 + $0xe0] sm:$0xf] %v2220
        %2477 = vst [vmem:[%s244 + $0xe4] sm:$0xf] %v2221
        %2478 = vst [vmem:[%s244 + $0xe8] sm:$0xf] %v2222
        %2479 = vst [vmem:[%s244 + $0xec] sm:$0xf] %v2223
        %2480 = vst [vmem:[%s244 + $0xf0] sm:$0xf] %v2224
        %2481 = vst [vmem:[%s244 + $0xf4] sm:$0xf] %v2225
        %2482 = vst [vmem:[%s244 + $0xf8] sm:$0xf] %v2226
        %2483 = vst [vmem:[%s244 + $0xfc] sm:$0xf] %v2227
        %2484 = vst [vmem:[%s244 + $0x100] sm:$0xf] %v2228
        %2485 = vst [vmem:[%s244 + $0x104] sm:$0xf] %v2229
        %2486 = vst [vmem:[%s244 + $0x108] sm:$0xf] %v2230
        %2487 = vst [vmem:[%s244 + $0x10c] sm:$0xf] %v2231
        %2488 = vst [vmem:[%s244 + $0x110] sm:$0xf] %v2232
        %2489 = vst [vmem:[%s244 + $0x114] sm:$0xf] %v2233
        %2490 = vst [vmem:[%s244 + $0x118] sm:$0xf] %v2234
        %2491 = vst [vmem:[%s244 + $0x11c] sm:$0xf] %v2235
        %2492 = vst [vmem:[%s244 + $0x120] sm:$0xf] %v2236
        %2493 = vst [vmem:[%s244 + $0x124] sm:$0xf] %v2237
        %2494 = vst [vmem:[%s244 + $0x128] sm:$0xf] %v2238
        %2495 = vst [vmem:[%s244 + $0x12c] sm:$0xf] %v2239
        %2496 = vst [vmem:[%s244 + $0x130] sm:$0xf] %v2240
        %2497 = vst [vmem:[%s244 + $0x134] sm:$0xf] %v2241
        %2498 = vst [vmem:[%s244 + $0x138] sm:$0xf] %v2242
        %2499 = vst [vmem:[%s244 + $0x13c] sm:$0xf] %v2243
        %2500 = vst [vmem:[%s244 + $0x140] sm:$0xf] %v2244
        %2501 = vst [vmem:[%s244 + $0x144] sm:$0xf] %v2245
        %2502 = vst [vmem:[%s244 + $0x148] sm:$0xf] %v2246
        %2503 = vst [vmem:[%s244 + $0x14c] sm:$0xf] %v2247
        %2504 = vst [vmem:[%s244 + $0x150] sm:$0xf] %v2248
        %2505 = vst [vmem:[%s244 + $0x154] sm:$0xf] %v2249
        %2506 = vst [vmem:[%s244 + $0x158] sm:$0xf] %v2250
        %2507 = vst [vmem:[%s244 + $0x15c] sm:$0xf] %v2251
        %2508 = vst [vmem:[%s244 + $0x160] sm:$0xf] %v2252
        %2509 = vst [vmem:[%s244 + $0x164] sm:$0xf] %v2253
        %2510 = vst [vmem:[%s244 + $0x168] sm:$0xf] %v2254
        %2511 = vst [vmem:[%s244 + $0x16c] sm:$0xf] %v2255
        %2512 = vst [vmem:[%s244 + $0x170] sm:$0xf] %v2256
        %2513 = vst [vmem:[%s244 + $0x174] sm:$0xf] %v2257
        %2514 = vst [vmem:[%s244 + $0x178] sm:$0xf] %v2258
        %2515 = vst [vmem:[%s244 + $0x17c] sm:$0xf] %v2259
        %2516 = vst [vmem:[%s244 + $0x180] sm:$0xf] %v2260
        %2517 = vst [vmem:[%s244 + $0x184] sm:$0xf] %v2261
        %2518 = vst [vmem:[%s244 + $0x188] sm:$0xf] %v2262
        %2519 = vst [vmem:[%s244 + $0x18c] sm:$0xf] %v2263
        %2520 = vst [vmem:[%s244 + $0x190] sm:$0xf] %v2264
        %2521 = vst [vmem:[%s244 + $0x194] sm:$0xf] %v2265
        %2522 = vst [vmem:[%s244 + $0x198] sm:$0xf] %v2266
        %2523 = vst [vmem:[%s244 + $0x19c] sm:$0xf] %v2267
        %2524 = vst [vmem:[%s244 + $0x1a0] sm:$0xf] %v2268
        %2525 = vst [vmem:[%s244 + $0x1a4] sm:$0xf] %v2269
        %2526 = vst [vmem:[%s244 + $0x1a8] sm:$0xf] %v2270
        %2527 = vst [vmem:[%s244 + $0x1ac] sm:$0xf] %v2271
        %2528 = vst [vmem:[%s244 + $0x1b0] sm:$0xf] %v2272
        %2529 = vst [vmem:[%s244 + $0x1b4] sm:$0xf] %v2273
        %2530 = vst [vmem:[%s244 + $0x1b8] sm:$0xf] %v2274
        %2531 = vst [vmem:[%s244 + $0x1bc] sm:$0xf] %v2275
        %2532 = vst [vmem:[%s244 + $0x1c0] sm:$0xf] %v2276
        %2533 = vst [vmem:[%s244 + $0x1c4] sm:$0xf] %v2277
        %2534 = vst [vmem:[%s244 + $0x1c8] sm:$0xf] %v2278
        %2535 = vst [vmem:[%s244 + $0x1cc] sm:$0xf] %v2279
        %2536 = vst [vmem:[%s244 + $0x1d0] sm:$0xf] %v2280
        %2537 = vst [vmem:[%s244 + $0x1d4] sm:$0xf] %v2281
        %2538 = vst [vmem:[%s244 + $0x1d8] sm:$0xf] %v2282
        %2539 = vst [vmem:[%s244 + $0x1dc] sm:$0xf] %v2283
        %2540 = vst [vmem:[%s244 + $0x1e0] sm:$0xf] %v2284
        %2541 = vst [vmem:[%s244 + $0x1e4] sm:$0xf] %v2285
        %2542 = vst [vmem:[%s244 + $0x1e8] sm:$0xf] %v2286
        %2543 = vst [vmem:[%s244 + $0x1ec] sm:$0xf] %v2287
        %2544 = vst [vmem:[%s244 + $0x1f0] sm:$0xf] %v2288
        %2545 = vst [vmem:[%s244 + $0x1f4] sm:$0xf] %v2289
        %2546 = vst [vmem:[%s244 + $0x1f8] sm:$0xf] %v2290
        %2547 = vst [vmem:[%s244 + $0x1fc] sm:$0xf] %v2291
        %s2548 = sand.u32 %s121, 1
        %s2549 = scalar_lea.sflag [#allocation4], %s2548
        %s2550 = sand.u32 %s121, 1
        %s2551 = smul.addr %s2550, 512
        %s2552 = scalar_lea.vmem [#allocation8], %s2551
        // Predicated region
        $region45: #{tpu_custom_call.1} parent=31 // pred_check
          %p2553 = pneg %p131
        $region46: #{tpu_custom_call.1} parent=31 // pred_check_branch
          %2555 = sbr.rel (%p2553) target = $region48
        $region47: #{tpu_custom_call.1} parent=31 // pred_region
          %s2556 = smul.u32 128, %s25
          %s2558 = ssub.s32 8192, 8192
          %2559 = vsyncadd %s2549, %s2558
          %s2560 = sadd.s32 %s26, %s2556
          %s2561 = smul.addr %s2560, 64
          %s2562 = scalar_lea.hbm %s3, %s2561
          %s2563 = sshll.u32 %s2552, 4
          %s2564 = int_to_ptr.vmem [resolvable:$true] %s2563
          %2569 = dma.vmem_to_hbm [thread:$0]  %s2564, 8192, %s2562, %s2549, 64, 64, 4
        $region48: #{tpu_custom_call.1} parent=31 // pred_fallthru
          _
      $region32: #{tpu_custom_call.1} parent=5 // pred_fallthru
        _
      %p2570 = scmp.le.s32.totalorder 2, %s16
      // Predicated region
      $region49: #{tpu_custom_call.1} parent=5 // pred_check
        %p2571 = pneg %p2570
      $region50: #{tpu_custom_call.1} parent=5 // pred_check_branch
        %2573 = sbr.rel (%p2571) target = $region52
      $region51: #{tpu_custom_call.1} parent=5 // pred_region
        %s2574 = ssub.s32 %s16, 2
        // Predicated region
        $region53: #{tpu_custom_call.1} parent=51 // pred_check
          %p2575 = pneg %p137
        $region54: #{tpu_custom_call.1} parent=51 // pred_check_branch
          %2577 = sbr.rel (%p2575) target = $region56
        $region55: #{tpu_custom_call.1} parent=51 // pred_region
          %s2578 = sand.u32 %s122, 1
          %s2579 = scalar_lea.sflag [#allocation4], %s2578
          %s2580 = sand.u32 %s122, 1
          %s2581 = smul.addr %s2580, 512
          %s2582 = scalar_lea.vmem [#allocation8], %s2581
          %2583 = dma.done %s2579, 8192
        $region56: #{tpu_custom_call.1} parent=51 // pred_fallthru
          _
      $region52: #{tpu_custom_call.1} parent=5 // pred_fallthru
        _
    $region6: #{tpu_custom_call.1} parent=1 // loop_footer
      %s20 = sadd.s32 1, %s16
    $region7: #{tpu_custom_call.1} parent=1 // loop_footer_branch
      %15 = sbr.rel target = $region3
    $region8: #{tpu_custom_call.1} parent=1 // loop_exit
      _
    %2584 = vsyncpa [#allocation3], 1
    %s2585 = scalar_lea.sflag [#allocation3], 1
    %2586 = vsyncpa %s2585, 1
    %2587 = vsyncpa [#allocation6], 1
    %2588 = vsyncpa [#allocation4], 1
    %s2589 = scalar_lea.sflag [#allocation4], 1
    %2590 = vsyncpa %s2589, 1

</llo_original>
